<compile_context>
chip_gen: v5e
topology: v5e:2x2
jax: 0.10.0
libtpu: 0.0.40
codegen_flags: <defaults>
</compile_context>

<pallas_src>
import functools

import jax
import jax.numpy as jnp
from jax.experimental import pallas as pl
from jax.experimental.pallas import tpu as pltpu


# bf16 operands hit the native MXU rate and halve weight DMA bytes;
# accumulation stays f32 via preferred_element_type.
_MATMUL_DTYPE = jnp.bfloat16

_INV_SQRT2 = 0.7071067811865476
_SQRT_2_OVER_PI = 0.7978845608028654


# ----------------------------------------------------------------------------
# In-kernel math helpers
# ----------------------------------------------------------------------------
def _mm(a, b):
    return jnp.dot(a.astype(_MATMUL_DTYPE), b.astype(_MATMUL_DTYPE),
                   preferred_element_type=jnp.float32)


def _bmm(eq, a, b):
    return jnp.einsum(eq, a.astype(_MATMUL_DTYPE), b.astype(_MATMUL_DTYPE),
                      preferred_element_type=jnp.float32)


def _gelu_tanh(x):
    # tanh-GELU: one EUP transcendental (separate VLIW slot) instead of the
    # VALU-heavy rational-erf approximation.  |err| vs exact GELU ~ 3e-3.
    return 0.5 * x * (1.0 + jnp.tanh(_SQRT_2_OVER_PI
                                     * (x + 0.044715 * x * x * x)))


def _layer_norm(v, w, b, eps=1e-5):
    mu = jnp.mean(v, axis=-1, keepdims=True)
    var = jnp.mean((v - mu) ** 2, axis=-1, keepdims=True)
    return (v - mu) * jax.lax.rsqrt(var + eps) * w + b


# ----------------------------------------------------------------------------
# Pallas kernel: the full encoder stack in ONE invocation (no grid).
# All stacked layer weights + the (B*S, E) activation live in VMEM.
# ----------------------------------------------------------------------------
def _encoder_stack_kernel(x_ref, wqkv_ref, wo_ref, w1_ref, w2_ref, vec_ref,
                          o_ref, *, B, S, heads, d, hid, num_layers):
    E = heads * d
    x = x_ref[...].astype(jnp.float32)           # (B*S, E), VMEM/vreg resident

    for layer in range(num_layers):              # static unroll over layers
        vecs = vec_ref[layer]                    # (8, W) packed bias/LN slab
        bqkv = vecs[0:1, :3 * E]
        bo = vecs[1:2, :E]
        ln1w = vecs[2:3, :E]
        ln1b = vecs[3:4, :E]
        b1 = vecs[4:5, :hid]
        b2 = vecs[5:6, :E]
        ln2w = vecs[6:7, :E]
        ln2b = vecs[7:8, :E]

        # ---- fused QKV: one lane-dense bf16 MXU push for all heads/rows ----
        qkv = _mm(x, wqkv_ref[layer]) + bqkv     # (B*S, 3E) f32
        q = qkv[:, 0 * E:1 * E]
        k = qkv[:, 1 * E:2 * E]
        v = qkv[:, 2 * E:3 * E]

        scale = 2.0 / d                          # reference `d ** 1 / 2` == d/2

        # ---- attention, batched over B per head ----------------------------
        # TODO(synk): collapse the per-head loop into a single all-heads
        # einsum ('bqhd,bkhd->bhqk') once multi-batch-dim dot_general
        # lowering is confirmed; at production E (>=128) the per-head slices
        # below are vreg-aligned anyway, and the (S,S) scores should then be
        # flash-tiled over KV for v7x's 64 MiB VMEM.
        ctx_heads = []
        for h in range(heads):                   # static, short loop
            sl = slice(h * d, (h + 1) * d)
            qh = q[:, sl].reshape(B, S, d)       # leading-dim split: layout no-op
            kh = k[:, sl].reshape(B, S, d)
            vh = v[:, sl].reshape(B, S, d)
            s = _bmm('bqd,bkd->bqk', qh, kh) * scale
            # Attention mask intentionally ignored: reference masked_fill is
            # not in-place and its result is discarded.
            s = s - jnp.max(s, axis=-1, keepdims=True)
            p = jnp.exp(s)
            p = p * pl.reciprocal(jnp.sum(p, axis=-1, keepdims=True),
                                  approx=True)
            ctx_heads.append(_bmm('bqk,bkd->bqd', p, vh).reshape(B * S, d))

        # single head concat + ONE K=E output projection (no per-head pushes)
        ctx = jnp.concatenate(ctx_heads, axis=-1)        # (B*S, E)
        attn = _mm(ctx, wo_ref[layer]) + bo

        # ---- residual + LayerNorm1 (dropout = identity in eval mode) -------
        add = _layer_norm(attn + x, ln1w, ln1b)

        # ---- feed-forward: Linear -> GELU(tanh) -> Linear -------------------
        h1 = _gelu_tanh(_mm(add, w1_ref[layer]) + b1)
        fc = _mm(h1, w2_ref[layer]) + b2

        x = _layer_norm(add + fc, ln2w, ln2b)

    o_ref[...] = x.astype(o_ref.dtype)


def encoder_pallas(x_emb_flat, packed, *, B, S, heads):
    """Run all transformer blocks in one single-invocation pallas_call."""
    BS, E = x_emb_flat.shape
    L = packed['wqkv'].shape[0]
    hid = packed['w1'].shape[-1]
    d = E // heads

    kernel = functools.partial(_encoder_stack_kernel,
                               B=B, S=S, heads=heads, d=d, hid=hid,
                               num_layers=L)

    # No grid: everything (stacked bf16 weights + activation slab) fits VMEM
    # at these sizes, so a single invocation avoids per-grid-step overhead.
    # TODO(synk): if E becomes a multiple of 128 the activation/output slab is
    # lane-dense automatically; for tiny E the final store stays a masked vst.
    fn = pl.pallas_call(
        kernel,
        out_shape=jax.ShapeDtypeStruct((BS, E), x_emb_flat.dtype),
        in_specs=[pl.BlockSpec(memory_space=pltpu.MemorySpace.VMEM)] * 6,
        out_specs=pl.BlockSpec(memory_space=pltpu.MemorySpace.VMEM),
    )
    return fn(x_emb_flat, packed['wqkv'], packed['wo'], packed['w1'],
              packed['w2'], packed['vecs'])


# ----------------------------------------------------------------------------
# Parameter init (deterministic, shapes from the module __init__) + packing
# ----------------------------------------------------------------------------
def pack_encoder_params(params, heads):
    """Stack per-layer weights (bf16) and pre-pack per-head QKV into
    block-diagonal (E, 3E) weights; pack the 8 small bias/LN vectors into one
    lane-dense (8, W) f32 slab."""
    layers = params['layers']
    E = params['tok_emb'].shape[1]
    hid = layers[0]['w1'].shape[1]
    W = max(3 * E, hid, E)
    W = ((W + 127) // 128) * 128             # lane-dense slab width

    eye = jnp.eye(heads, dtype=jnp.float32)

    def blockdiag(w):                        # (d, d) per-head weight -> (E, E)
        return jnp.einsum('ab,ij->aibj', eye, w).reshape(E, E)

    def row(v):
        v = v.reshape(1, -1)
        return jnp.pad(v, ((0, 0), (0, W - v.shape[1])))

    wqkv, wo, w1, w2, vecs = [], [], [], [], []
    for lp in layers:
        wqkv.append(jnp.concatenate(
            [blockdiag(lp['wq']), blockdiag(lp['wk']), blockdiag(lp['wv'])],
            axis=1))                                             # (E, 3E)
        wo.append(lp['wo'])
        w1.append(lp['w1'])
        w2.append(lp['w2'])
        bqkv = jnp.concatenate([jnp.tile(lp['bq'], (1, heads)),
                                jnp.tile(lp['bk'], (1, heads)),
                                jnp.tile(lp['bv'], (1, heads))], axis=1)
        vecs.append(jnp.concatenate(
            [row(bqkv), row(lp['bo']), row(lp['ln1w']), row(lp['ln1b']),
             row(lp['b1']), row(lp['b2']), row(lp['ln2w']), row(lp['ln2b'])],
            axis=0))                                             # (8, W)

    wdt = _MATMUL_DTYPE   # bf16 weights: native MXU rate, half the DMA bytes
    return {'wqkv': jnp.stack(wqkv).astype(wdt),
            'wo': jnp.stack(wo).astype(wdt),
            'w1': jnp.stack(w1).astype(wdt),
            'w2': jnp.stack(w2).astype(wdt),
            'vecs': jnp.stack(vecs)}          # biases / LN params stay f32


def init_params(key, vocab_size, embed_dims, heads, forward_expansion,
                num_layers, max_len):
    d = embed_dims // heads
    hid = embed_dims * forward_expansion
    keys = jax.random.split(key, num_layers + 1)

    params = {
        # nn.Embedding(vocab_size, embed_dims)
        'tok_emb': 0.02 * jax.random.normal(keys[0],
                                            (vocab_size, embed_dims),
                                            jnp.float32),
        # nn.Parameter(torch.zeros(1, max_len, embed_dims))
        'pos_emb': jnp.zeros((1, max_len, embed_dims), jnp.float32),
        'layers': [],
    }

    def lin(k, fan_in, fan_out):             # stored as (in, out): y = x @ W + b
        return (jax.random.normal(k, (fan_in, fan_out), jnp.float32)
                * (1.0 / jnp.sqrt(fan_in)))

    def bias(k, n):
        return 0.01 * jax.random.normal(k, (1, n), jnp.float32)

    for li in range(num_layers):
        lk = jax.random.split(keys[li + 1], 12)
        layer = {
            'wq': lin(lk[0], d, d), 'bq': bias(lk[1], d),
            'wk': lin(lk[2], d, d), 'bk': bias(lk[3], d),
            'wv': lin(lk[4], d, d), 'bv': bias(lk[5], d),
            'wo': lin(lk[6], embed_dims, embed_dims),
            'bo': bias(lk[7], embed_dims),
            'w1': lin(lk[8], embed_dims, hid), 'b1': bias(lk[9], hid),
            'w2': lin(lk[10], hid, embed_dims), 'b2': bias(lk[11], embed_dims),
            # nn.LayerNorm default init: weight = 1, bias = 0
            'ln1w': jnp.ones((1, embed_dims), jnp.float32),
            'ln1b': jnp.zeros((1, embed_dims), jnp.float32),
            'ln2w': jnp.ones((1, embed_dims), jnp.float32),
            'ln2b': jnp.zeros((1, embed_dims), jnp.float32),
        }
        params['layers'].append(layer)

    params['packed'] = pack_encoder_params(params, heads)
    return params


# ----------------------------------------------------------------------------
# Encoder forward
# ----------------------------------------------------------------------------
def encoder_forward(x_ids, mask, params, heads):
    # TODO(synk): token-embedding gather (data-dependent row lookup) stays in
    # plain JAX; everything else (all transformer blocks) runs in the kernel.
    del mask  # reference masked_fill is not in-place -> mask has no effect
    B, S = x_ids.shape
    emb = params['tok_emb'][x_ids] + params['pos_emb'][:, :S, :]   # (B, S, E)
    E = emb.shape[-1]
    out = encoder_pallas(emb.reshape(B * S, E), params['packed'],
                         B=B, S=S, heads=heads)
    return out.reshape(B, S, E)


# ----------------------------------------------------------------------------
# Pure-JAX reference (mirrors the PyTorch module, eval mode) for validation
# ----------------------------------------------------------------------------
def _reference_forward(x_ids, params, heads):
    B, S = x_ids.shape
    out = params['tok_emb'][x_ids] + params['pos_emb'][:, :S, :]
    E = out.shape[-1]
    d = E // heads

    def ln(v, w, b):
        mu = v.mean(-1, keepdims=True)
        var = ((v - mu) ** 2).mean(-1, keepdims=True)
        return (v - mu) / jnp.sqrt(var + 1e-5) * w[0] + b[0]

    for lp in params['layers']:
        x = out
        xh = x.reshape(B, S, heads, d)
        q = xh @ lp['wq'] + lp['bq'][0]
        k = xh @ lp['wk'] + lp['bk'][0]
        v = xh @ lp['wv'] + lp['bv'][0]
        score = jnp.einsum('bqhd,bkhd->bhqk', q, k)
        score = jax.nn.softmax(score / (d ** 1 / 2), axis=-1)  # d/2 divisor
        ctx = jnp.einsum('bhqk,bkhd->bqhd', score, v).reshape(B, S, E)
        attn = ctx @ lp['wo'] + lp['bo'][0]
        add = ln(attn + x, lp['ln1w'], lp['ln1b'])
        h1 = add @ lp['w1'] + lp['b1'][0]
        h1 = 0.5 * h1 * (1.0 + jax.lax.erf(h1 * _INV_SQRT2))   # exact GELU
        fc = h1 @ lp['w2'] + lp['b2'][0]
        out = ln(add + fc, lp['ln2w'], lp['ln2b'])
    return out


if __name__ == "__main__":
    vocab_size = 50
    embed_dims = 32
    max_len = 16
    heads = 4
    forward_expansion = 2
    num_layers = 2
    dropout = 0.1   # eval mode -> identity

    B, S = 2, 8

    key = jax.random.PRNGKey(0)
    kp, kx = jax.random.split(key)

    params = init_params(kp, vocab_size, embed_dims, heads,
                         forward_expansion, num_layers, max_len)
    x_ids = jax.random.randint(kx, (B, S), 0, vocab_size, dtype=jnp.int32)
    mask = jnp.ones((B, 1, S, S), jnp.float32)  # accepted but (correctly) unused

    out = jax.block_until_ready(encoder_forward(x_ids, mask, params, heads))

    assert out.shape == (B, S, embed_dims), out.shape
    assert jnp.all(jnp.isfinite(out))

    ref = _reference_forward(x_ids, params, heads)
    err = float(jnp.max(jnp.abs(out - ref)))
    assert err < 5e-2, f"max abs error vs reference = {err}"

    print("KERNEL_OK")
</pallas_src>

<mosaic_0001>
module attributes {stable_mosaic.version = 11 : i64} {
  func.func @_encoder_stack_kernel(%arg0: memref<16x32xf32, #tpu.memory_space<vmem>>, %arg1: memref<2x32x96xbf16, #tpu.memory_space<vmem>>, %arg2: memref<2x32x32xbf16, #tpu.memory_space<vmem>>, %arg3: memref<2x32x64xbf16, #tpu.memory_space<vmem>>, %arg4: memref<2x64x32xbf16, #tpu.memory_space<vmem>>, %arg5: memref<2x8x128xf32, #tpu.memory_space<vmem>>, %arg6: memref<16x32xf32, #tpu.memory_space<vmem>>) attributes {dimension_semantics = [], scalar_prefetch = 0 : i64, scratch_operands = 0 : i64, tpu.core_type = #tpu.core_type<tc>} {
    %c0 = arith.constant 0 : index
    %c0_0 = arith.constant 0 : index
    %0 = vector.load %arg0[%c0, %c0_0] : memref<16x32xf32, #tpu.memory_space<vmem>>, vector<16x32xf32>
    %c0_1 = arith.constant 0 : index
    %c0_2 = arith.constant 0 : index
    %c0_3 = arith.constant 0 : index
    %1 = vector.load %arg5[%c0_1, %c0_2, %c0_3] : memref<2x8x128xf32, #tpu.memory_space<vmem>>, vector<1x8x128xf32>
    %2 = vector.shape_cast %1 : vector<1x8x128xf32> to vector<8x128xf32>
    %3 = vector.extract_strided_slice %2 {offsets = [0, 0], sizes = [1, 96], strides = [1, 1]} : vector<8x128xf32> to vector<1x96xf32>
    %4 = vector.extract_strided_slice %2 {offsets = [1, 0], sizes = [1, 32], strides = [1, 1]} : vector<8x128xf32> to vector<1x32xf32>
    %5 = vector.extract_strided_slice %2 {offsets = [2, 0], sizes = [1, 32], strides = [1, 1]} : vector<8x128xf32> to vector<1x32xf32>
    %6 = vector.extract_strided_slice %2 {offsets = [3, 0], sizes = [1, 32], strides = [1, 1]} : vector<8x128xf32> to vector<1x32xf32>
    %7 = vector.extract_strided_slice %2 {offsets = [4, 0], sizes = [1, 64], strides = [1, 1]} : vector<8x128xf32> to vector<1x64xf32>
    %8 = vector.extract_strided_slice %2 {offsets = [5, 0], sizes = [1, 32], strides = [1, 1]} : vector<8x128xf32> to vector<1x32xf32>
    %9 = vector.extract_strided_slice %2 {offsets = [6, 0], sizes = [1, 32], strides = [1, 1]} : vector<8x128xf32> to vector<1x32xf32>
    %10 = vector.extract_strided_slice %2 {offsets = [7, 0], sizes = [1, 32], strides = [1, 1]} : vector<8x128xf32> to vector<1x32xf32>
    %c0_4 = arith.constant 0 : index
    %c0_5 = arith.constant 0 : index
    %c0_6 = arith.constant 0 : index
    %11 = vector.load %arg1[%c0_4, %c0_5, %c0_6] : memref<2x32x96xbf16, #tpu.memory_space<vmem>>, vector<1x32x96xbf16>
    %12 = vector.shape_cast %11 : vector<1x32x96xbf16> to vector<32x96xbf16>
    %13 = arith.truncf %0 : vector<16x32xf32> to vector<16x32xbf16>
    %cst = arith.constant dense<0.000000e+00> : vector<16x96xf32>
    %14 = tpu.matmul %13, %12, %cst {dimension_numbers = #tpu.dot_dimension_numbers<[1], [0], [0], [1], [0, 0, 1, 1], [], []>} : vector<16x32xbf16>, vector<32x96xbf16>, vector<16x96xf32> -> vector<16x96xf32>
    %15 = vector.broadcast %3 : vector<1x96xf32> to vector<16x96xf32>
    %16 = arith.addf %14, %15 : vector<16x96xf32>
    %17 = vector.extract_strided_slice %16 {offsets = [0, 0], sizes = [16, 32], strides = [1, 1]} : vector<16x96xf32> to vector<16x32xf32>
    %18 = vector.extract_strided_slice %16 {offsets = [0, 32], sizes = [16, 32], strides = [1, 1]} : vector<16x96xf32> to vector<16x32xf32>
    %19 = vector.extract_strided_slice %16 {offsets = [0, 64], sizes = [16, 32], strides = [1, 1]} : vector<16x96xf32> to vector<16x32xf32>
    %20 = vector.extract_strided_slice %17 {offsets = [0, 0], sizes = [16, 8], strides = [1, 1]} : vector<16x32xf32> to vector<16x8xf32>
    %21 = vector.shape_cast %20 : vector<16x8xf32> to vector<2x8x8xf32>
    %22 = vector.extract_strided_slice %18 {offsets = [0, 0], sizes = [16, 8], strides = [1, 1]} : vector<16x32xf32> to vector<16x8xf32>
    %23 = vector.shape_cast %22 : vector<16x8xf32> to vector<2x8x8xf32>
    %24 = vector.extract_strided_slice %19 {offsets = [0, 0], sizes = [16, 8], strides = [1, 1]} : vector<16x32xf32> to vector<16x8xf32>
    %25 = vector.shape_cast %24 : vector<16x8xf32> to vector<2x8x8xf32>
    %26 = arith.truncf %21 : vector<2x8x8xf32> to vector<2x8x8xbf16>
    %27 = arith.truncf %23 : vector<2x8x8xf32> to vector<2x8x8xbf16>
    "tpu.trace_start"() <{level = 10 : i32, message = "bqd,bkd->bqk"}> : () -> ()
    %cst_7 = arith.constant dense<0.000000e+00> : vector<2x8x8xf32>
    %28 = tpu.matmul %26, %27, %cst_7 {dimension_numbers = #tpu.dot_dimension_numbers<[2], [2], [1], [1], [0, 0, 0, 1, 1, 1], [0], [0]>} : vector<2x8x8xbf16>, vector<2x8x8xbf16>, vector<2x8x8xf32> -> vector<2x8x8xf32>
    "tpu.trace_stop"() : () -> ()
    %cst_8 = arith.constant 2.500000e-01 : f32
    %29 = vector.broadcast %cst_8 : f32 to vector<2x8x8xf32>
    %30 = arith.mulf %28, %29 : vector<2x8x8xf32>
    %cst_9 = arith.constant dense<0xFF800000> : vector<2x8xf32>
    %31 = vector.multi_reduction <maximumf>, %30, %cst_9 [2] : vector<2x8x8xf32> to vector<2x8xf32>
    %32 = vector.shape_cast %31 : vector<2x8xf32> to vector<2x8x1xf32>
    %33 = vector.broadcast %32 : vector<2x8x1xf32> to vector<2x8x8xf32>
    %34 = arith.subf %30, %33 : vector<2x8x8xf32>
    %35 = math.exp %34 : vector<2x8x8xf32>
    %cst_10 = arith.constant dense<0.000000e+00> : vector<2x8xf32>
    %36 = vector.multi_reduction <add>, %35, %cst_10 [2] : vector<2x8x8xf32> to vector<2x8xf32>
    %37 = vector.shape_cast %36 : vector<2x8xf32> to vector<2x8x1xf32>
    %38 = tpu.reciprocal %37 {approx = true} : vector<2x8x1xf32> -> vector<2x8x1xf32>
    %39 = vector.broadcast %38 : vector<2x8x1xf32> to vector<2x8x8xf32>
    %40 = arith.mulf %35, %39 : vector<2x8x8xf32>
    %41 = arith.truncf %40 : vector<2x8x8xf32> to vector<2x8x8xbf16>
    %42 = arith.truncf %25 : vector<2x8x8xf32> to vector<2x8x8xbf16>
    "tpu.trace_start"() <{level = 10 : i32, message = "bqk,bkd->bqd"}> : () -> ()
    %cst_11 = arith.constant dense<0.000000e+00> : vector<2x8x8xf32>
    %43 = tpu.matmul %41, %42, %cst_11 {dimension_numbers = #tpu.dot_dimension_numbers<[2], [1], [1], [2], [0, 0, 0, 1, 1, 2], [0], [0]>} : vector<2x8x8xbf16>, vector<2x8x8xbf16>, vector<2x8x8xf32> -> vector<2x8x8xf32>
    "tpu.trace_stop"() : () -> ()
    %44 = vector.shape_cast %43 : vector<2x8x8xf32> to vector<16x8xf32>
    %45 = vector.extract_strided_slice %17 {offsets = [0, 8], sizes = [16, 8], strides = [1, 1]} : vector<16x32xf32> to vector<16x8xf32>
    %46 = vector.shape_cast %45 : vector<16x8xf32> to vector<2x8x8xf32>
    %47 = vector.extract_strided_slice %18 {offsets = [0, 8], sizes = [16, 8], strides = [1, 1]} : vector<16x32xf32> to vector<16x8xf32>
    %48 = vector.shape_cast %47 : vector<16x8xf32> to vector<2x8x8xf32>
    %49 = vector.extract_strided_slice %19 {offsets = [0, 8], sizes = [16, 8], strides = [1, 1]} : vector<16x32xf32> to vector<16x8xf32>
    %50 = vector.shape_cast %49 : vector<16x8xf32> to vector<2x8x8xf32>
    %51 = arith.truncf %46 : vector<2x8x8xf32> to vector<2x8x8xbf16>
    %52 = arith.truncf %48 : vector<2x8x8xf32> to vector<2x8x8xbf16>
    "tpu.trace_start"() <{level = 10 : i32, message = "bqd,bkd->bqk"}> : () -> ()
    %cst_12 = arith.constant dense<0.000000e+00> : vector<2x8x8xf32>
    %53 = tpu.matmul %51, %52, %cst_12 {dimension_numbers = #tpu.dot_dimension_numbers<[2], [2], [1], [1], [0, 0, 0, 1, 1, 1], [0], [0]>} : vector<2x8x8xbf16>, vector<2x8x8xbf16>, vector<2x8x8xf32> -> vector<2x8x8xf32>
    "tpu.trace_stop"() : () -> ()
    %cst_13 = arith.constant 2.500000e-01 : f32
    %54 = vector.broadcast %cst_13 : f32 to vector<2x8x8xf32>
    %55 = arith.mulf %53, %54 : vector<2x8x8xf32>
    %cst_14 = arith.constant dense<0xFF800000> : vector<2x8xf32>
    %56 = vector.multi_reduction <maximumf>, %55, %cst_14 [2] : vector<2x8x8xf32> to vector<2x8xf32>
    %57 = vector.shape_cast %56 : vector<2x8xf32> to vector<2x8x1xf32>
    %58 = vector.broadcast %57 : vector<2x8x1xf32> to vector<2x8x8xf32>
    %59 = arith.subf %55, %58 : vector<2x8x8xf32>
    %60 = math.exp %59 : vector<2x8x8xf32>
    %cst_15 = arith.constant dense<0.000000e+00> : vector<2x8xf32>
    %61 = vector.multi_reduction <add>, %60, %cst_15 [2] : vector<2x8x8xf32> to vector<2x8xf32>
    %62 = vector.shape_cast %61 : vector<2x8xf32> to vector<2x8x1xf32>
    %63 = tpu.reciprocal %62 {approx = true} : vector<2x8x1xf32> -> vector<2x8x1xf32>
    %64 = vector.broadcast %63 : vector<2x8x1xf32> to vector<2x8x8xf32>
    %65 = arith.mulf %60, %64 : vector<2x8x8xf32>
    %66 = arith.truncf %65 : vector<2x8x8xf32> to vector<2x8x8xbf16>
    %67 = arith.truncf %50 : vector<2x8x8xf32> to vector<2x8x8xbf16>
    "tpu.trace_start"() <{level = 10 : i32, message = "bqk,bkd->bqd"}> : () -> ()
    %cst_16 = arith.constant dense<0.000000e+00> : vector<2x8x8xf32>
    %68 = tpu.matmul %66, %67, %cst_16 {dimension_numbers = #tpu.dot_dimension_numbers<[2], [1], [1], [2], [0, 0, 0, 1, 1, 2], [0], [0]>} : vector<2x8x8xbf16>, vector<2x8x8xbf16>, vector<2x8x8xf32> -> vector<2x8x8xf32>
    "tpu.trace_stop"() : () -> ()
    %69 = vector.shape_cast %68 : vector<2x8x8xf32> to vector<16x8xf32>
    %70 = vector.extract_strided_slice %17 {offsets = [0, 16], sizes = [16, 8], strides = [1, 1]} : vector<16x32xf32> to vector<16x8xf32>
    %71 = vector.shape_cast %70 : vector<16x8xf32> to vector<2x8x8xf32>
    %72 = vector.extract_strided_slice %18 {offsets = [0, 16], sizes = [16, 8], strides = [1, 1]} : vector<16x32xf32> to vector<16x8xf32>
    %73 = vector.shape_cast %72 : vector<16x8xf32> to vector<2x8x8xf32>
    %74 = vector.extract_strided_slice %19 {offsets = [0, 16], sizes = [16, 8], strides = [1, 1]} : vector<16x32xf32> to vector<16x8xf32>
    %75 = vector.shape_cast %74 : vector<16x8xf32> to vector<2x8x8xf32>
    %76 = arith.truncf %71 : vector<2x8x8xf32> to vector<2x8x8xbf16>
    %77 = arith.truncf %73 : vector<2x8x8xf32> to vector<2x8x8xbf16>
    "tpu.trace_start"() <{level = 10 : i32, message = "bqd,bkd->bqk"}> : () -> ()
    %cst_17 = arith.constant dense<0.000000e+00> : vector<2x8x8xf32>
    %78 = tpu.matmul %76, %77, %cst_17 {dimension_numbers = #tpu.dot_dimension_numbers<[2], [2], [1], [1], [0, 0, 0, 1, 1, 1], [0], [0]>} : vector<2x8x8xbf16>, vector<2x8x8xbf16>, vector<2x8x8xf32> -> vector<2x8x8xf32>
    "tpu.trace_stop"() : () -> ()
    %cst_18 = arith.constant 2.500000e-01 : f32
    %79 = vector.broadcast %cst_18 : f32 to vector<2x8x8xf32>
    %80 = arith.mulf %78, %79 : vector<2x8x8xf32>
    %cst_19 = arith.constant dense<0xFF800000> : vector<2x8xf32>
    %81 = vector.multi_reduction <maximumf>, %80, %cst_19 [2] : vector<2x8x8xf32> to vector<2x8xf32>
    %82 = vector.shape_cast %81 : vector<2x8xf32> to vector<2x8x1xf32>
    %83 = vector.broadcast %82 : vector<2x8x1xf32> to vector<2x8x8xf32>
    %84 = arith.subf %80, %83 : vector<2x8x8xf32>
    %85 = math.exp %84 : vector<2x8x8xf32>
    %cst_20 = arith.constant dense<0.000000e+00> : vector<2x8xf32>
    %86 = vector.multi_reduction <add>, %85, %cst_20 [2] : vector<2x8x8xf32> to vector<2x8xf32>
    %87 = vector.shape_cast %86 : vector<2x8xf32> to vector<2x8x1xf32>
    %88 = tpu.reciprocal %87 {approx = true} : vector<2x8x1xf32> -> vector<2x8x1xf32>
    %89 = vector.broadcast %88 : vector<2x8x1xf32> to vector<2x8x8xf32>
    %90 = arith.mulf %85, %89 : vector<2x8x8xf32>
    %91 = arith.truncf %90 : vector<2x8x8xf32> to vector<2x8x8xbf16>
    %92 = arith.truncf %75 : vector<2x8x8xf32> to vector<2x8x8xbf16>
    "tpu.trace_start"() <{level = 10 : i32, message = "bqk,bkd->bqd"}> : () -> ()
    %cst_21 = arith.constant dense<0.000000e+00> : vector<2x8x8xf32>
    %93 = tpu.matmul %91, %92, %cst_21 {dimension_numbers = #tpu.dot_dimension_numbers<[2], [1], [1], [2], [0, 0, 0, 1, 1, 2], [0], [0]>} : vector<2x8x8xbf16>, vector<2x8x8xbf16>, vector<2x8x8xf32> -> vector<2x8x8xf32>
    "tpu.trace_stop"() : () -> ()
    %94 = vector.shape_cast %93 : vector<2x8x8xf32> to vector<16x8xf32>
    %95 = vector.extract_strided_slice %17 {offsets = [0, 24], sizes = [16, 8], strides = [1, 1]} : vector<16x32xf32> to vector<16x8xf32>
    %96 = vector.shape_cast %95 : vector<16x8xf32> to vector<2x8x8xf32>
    %97 = vector.extract_strided_slice %18 {offsets = [0, 24], sizes = [16, 8], strides = [1, 1]} : vector<16x32xf32> to vector<16x8xf32>
    %98 = vector.shape_cast %97 : vector<16x8xf32> to vector<2x8x8xf32>
    %99 = vector.extract_strided_slice %19 {offsets = [0, 24], sizes = [16, 8], strides = [1, 1]} : vector<16x32xf32> to vector<16x8xf32>
    %100 = vector.shape_cast %99 : vector<16x8xf32> to vector<2x8x8xf32>
    %101 = arith.truncf %96 : vector<2x8x8xf32> to vector<2x8x8xbf16>
    %102 = arith.truncf %98 : vector<2x8x8xf32> to vector<2x8x8xbf16>
    "tpu.trace_start"() <{level = 10 : i32, message = "bqd,bkd->bqk"}> : () -> ()
    %cst_22 = arith.constant dense<0.000000e+00> : vector<2x8x8xf32>
    %103 = tpu.matmul %101, %102, %cst_22 {dimension_numbers = #tpu.dot_dimension_numbers<[2], [2], [1], [1], [0, 0, 0, 1, 1, 1], [0], [0]>} : vector<2x8x8xbf16>, vector<2x8x8xbf16>, vector<2x8x8xf32> -> vector<2x8x8xf32>
    "tpu.trace_stop"() : () -> ()
    %cst_23 = arith.constant 2.500000e-01 : f32
    %104 = vector.broadcast %cst_23 : f32 to vector<2x8x8xf32>
    %105 = arith.mulf %103, %104 : vector<2x8x8xf32>
    %cst_24 = arith.constant dense<0xFF800000> : vector<2x8xf32>
    %106 = vector.multi_reduction <maximumf>, %105, %cst_24 [2] : vector<2x8x8xf32> to vector<2x8xf32>
    %107 = vector.shape_cast %106 : vector<2x8xf32> to vector<2x8x1xf32>
    %108 = vector.broadcast %107 : vector<2x8x1xf32> to vector<2x8x8xf32>
    %109 = arith.subf %105, %108 : vector<2x8x8xf32>
    %110 = math.exp %109 : vector<2x8x8xf32>
    %cst_25 = arith.constant dense<0.000000e+00> : vector<2x8xf32>
    %111 = vector.multi_reduction <add>, %110, %cst_25 [2] : vector<2x8x8xf32> to vector<2x8xf32>
    %112 = vector.shape_cast %111 : vector<2x8xf32> to vector<2x8x1xf32>
    %113 = tpu.reciprocal %112 {approx = true} : vector<2x8x1xf32> -> vector<2x8x1xf32>
    %114 = vector.broadcast %113 : vector<2x8x1xf32> to vector<2x8x8xf32>
    %115 = arith.mulf %110, %114 : vector<2x8x8xf32>
    %116 = arith.truncf %115 : vector<2x8x8xf32> to vector<2x8x8xbf16>
    %117 = arith.truncf %100 : vector<2x8x8xf32> to vector<2x8x8xbf16>
    "tpu.trace_start"() <{level = 10 : i32, message = "bqk,bkd->bqd"}> : () -> ()
    %cst_26 = arith.constant dense<0.000000e+00> : vector<2x8x8xf32>
    %118 = tpu.matmul %116, %117, %cst_26 {dimension_numbers = #tpu.dot_dimension_numbers<[2], [1], [1], [2], [0, 0, 0, 1, 1, 2], [0], [0]>} : vector<2x8x8xbf16>, vector<2x8x8xbf16>, vector<2x8x8xf32> -> vector<2x8x8xf32>
    "tpu.trace_stop"() : () -> ()
    %119 = vector.shape_cast %118 : vector<2x8x8xf32> to vector<16x8xf32>
    %120 = tpu.concatenate %44, %69, %94, %119 in 1 : vector<16x8xf32>, vector<16x8xf32>, vector<16x8xf32>, vector<16x8xf32> -> vector<16x32xf32>
    %c0_27 = arith.constant 0 : index
    %c0_28 = arith.constant 0 : index
    %c0_29 = arith.constant 0 : index
    %121 = vector.load %arg2[%c0_27, %c0_28, %c0_29] : memref<2x32x32xbf16, #tpu.memory_space<vmem>>, vector<1x32x32xbf16>
    %122 = vector.shape_cast %121 : vector<1x32x32xbf16> to vector<32x32xbf16>
    %123 = arith.truncf %120 : vector<16x32xf32> to vector<16x32xbf16>
    %cst_30 = arith.constant dense<0.000000e+00> : vector<16x32xf32>
    %124 = tpu.matmul %123, %122, %cst_30 {dimension_numbers = #tpu.dot_dimension_numbers<[1], [0], [0], [1], [0, 0, 1, 1], [], []>} : vector<16x32xbf16>, vector<32x32xbf16>, vector<16x32xf32> -> vector<16x32xf32>
    %125 = vector.broadcast %4 : vector<1x32xf32> to vector<16x32xf32>
    %126 = arith.addf %124, %125 : vector<16x32xf32>
    %127 = arith.addf %126, %0 : vector<16x32xf32>
    %cst_31 = arith.constant dense<0.000000e+00> : vector<16xf32>
    %128 = vector.multi_reduction <add>, %127, %cst_31 [1] : vector<16x32xf32> to vector<16xf32>
    %129 = vector.shape_cast %128 : vector<16xf32> to vector<16x1xf32>
    %cst_32 = arith.constant 3.200000e+01 : f32
    %130 = vector.broadcast %cst_32 : f32 to vector<16x1xf32>
    %131 = arith.divf %129, %130 : vector<16x1xf32>
    %132 = vector.broadcast %131 : vector<16x1xf32> to vector<16x32xf32>
    %133 = arith.subf %127, %132 : vector<16x32xf32>
    %134 = arith.mulf %133, %133 : vector<16x32xf32>
    %cst_33 = arith.constant dense<0.000000e+00> : vector<16xf32>
    %135 = vector.multi_reduction <add>, %134, %cst_33 [1] : vector<16x32xf32> to vector<16xf32>
    %136 = vector.shape_cast %135 : vector<16xf32> to vector<16x1xf32>
    %cst_34 = arith.constant 3.200000e+01 : f32
    %137 = vector.broadcast %cst_34 : f32 to vector<16x1xf32>
    %138 = arith.divf %136, %137 : vector<16x1xf32>
    %139 = vector.broadcast %131 : vector<16x1xf32> to vector<16x32xf32>
    %140 = arith.subf %127, %139 : vector<16x32xf32>
    %cst_35 = arith.constant 9.99999974E-6 : f32
    %141 = vector.broadcast %cst_35 : f32 to vector<16x1xf32>
    %142 = arith.addf %138, %141 : vector<16x1xf32>
    %143 = math.rsqrt %142 : vector<16x1xf32>
    %144 = vector.broadcast %143 : vector<16x1xf32> to vector<16x32xf32>
    %145 = arith.mulf %140, %144 : vector<16x32xf32>
    %146 = vector.broadcast %5 : vector<1x32xf32> to vector<16x32xf32>
    %147 = arith.mulf %145, %146 : vector<16x32xf32>
    %148 = vector.broadcast %6 : vector<1x32xf32> to vector<16x32xf32>
    %149 = arith.addf %147, %148 : vector<16x32xf32>
    %c0_36 = arith.constant 0 : index
    %c0_37 = arith.constant 0 : index
    %c0_38 = arith.constant 0 : index
    %150 = vector.load %arg3[%c0_36, %c0_37, %c0_38] : memref<2x32x64xbf16, #tpu.memory_space<vmem>>, vector<1x32x64xbf16>
    %151 = vector.shape_cast %150 : vector<1x32x64xbf16> to vector<32x64xbf16>
    %152 = arith.truncf %149 : vector<16x32xf32> to vector<16x32xbf16>
    %cst_39 = arith.constant dense<0.000000e+00> : vector<16x64xf32>
    %153 = tpu.matmul %152, %151, %cst_39 {dimension_numbers = #tpu.dot_dimension_numbers<[1], [0], [0], [1], [0, 0, 1, 1], [], []>} : vector<16x32xbf16>, vector<32x64xbf16>, vector<16x64xf32> -> vector<16x64xf32>
    %154 = vector.broadcast %7 : vector<1x64xf32> to vector<16x64xf32>
    %155 = arith.addf %153, %154 : vector<16x64xf32>
    %cst_40 = arith.constant 5.000000e-01 : f32
    %156 = vector.broadcast %cst_40 : f32 to vector<16x64xf32>
    %157 = arith.mulf %156, %155 : vector<16x64xf32>
    %cst_41 = arith.constant 4.471500e-02 : f32
    %158 = vector.broadcast %cst_41 : f32 to vector<16x64xf32>
    %159 = arith.mulf %158, %155 : vector<16x64xf32>
    %160 = arith.mulf %159, %155 : vector<16x64xf32>
    %161 = arith.mulf %160, %155 : vector<16x64xf32>
    %162 = arith.addf %155, %161 : vector<16x64xf32>
    %cst_42 = arith.constant 0.797884583 : f32
    %163 = vector.broadcast %cst_42 : f32 to vector<16x64xf32>
    %164 = arith.mulf %163, %162 : vector<16x64xf32>
    %165 = math.tanh %164 : vector<16x64xf32>
    %cst_43 = arith.constant 1.000000e+00 : f32
    %166 = vector.broadcast %cst_43 : f32 to vector<16x64xf32>
    %167 = arith.addf %166, %165 : vector<16x64xf32>
    %168 = arith.mulf %157, %167 : vector<16x64xf32>
    %c0_44 = arith.constant 0 : index
    %c0_45 = arith.constant 0 : index
    %c0_46 = arith.constant 0 : index
    %169 = vector.load %arg4[%c0_44, %c0_45, %c0_46] : memref<2x64x32xbf16, #tpu.memory_space<vmem>>, vector<1x64x32xbf16>
    %170 = vector.shape_cast %169 : vector<1x64x32xbf16> to vector<64x32xbf16>
    %171 = arith.truncf %168 : vector<16x64xf32> to vector<16x64xbf16>
    %cst_47 = arith.constant dense<0.000000e+00> : vector<16x32xf32>
    %172 = tpu.matmul %171, %170, %cst_47 {dimension_numbers = #tpu.dot_dimension_numbers<[1], [0], [0], [1], [0, 0, 1, 1], [], []>} : vector<16x64xbf16>, vector<64x32xbf16>, vector<16x32xf32> -> vector<16x32xf32>
    %173 = vector.broadcast %8 : vector<1x32xf32> to vector<16x32xf32>
    %174 = arith.addf %172, %173 : vector<16x32xf32>
    %175 = arith.addf %149, %174 : vector<16x32xf32>
    %cst_48 = arith.constant dense<0.000000e+00> : vector<16xf32>
    %176 = vector.multi_reduction <add>, %175, %cst_48 [1] : vector<16x32xf32> to vector<16xf32>
    %177 = vector.shape_cast %176 : vector<16xf32> to vector<16x1xf32>
    %cst_49 = arith.constant 3.200000e+01 : f32
    %178 = vector.broadcast %cst_49 : f32 to vector<16x1xf32>
    %179 = arith.divf %177, %178 : vector<16x1xf32>
    %180 = vector.broadcast %179 : vector<16x1xf32> to vector<16x32xf32>
    %181 = arith.subf %175, %180 : vector<16x32xf32>
    %182 = arith.mulf %181, %181 : vector<16x32xf32>
    %cst_50 = arith.constant dense<0.000000e+00> : vector<16xf32>
    %183 = vector.multi_reduction <add>, %182, %cst_50 [1] : vector<16x32xf32> to vector<16xf32>
    %184 = vector.shape_cast %183 : vector<16xf32> to vector<16x1xf32>
    %cst_51 = arith.constant 3.200000e+01 : f32
    %185 = vector.broadcast %cst_51 : f32 to vector<16x1xf32>
    %186 = arith.divf %184, %185 : vector<16x1xf32>
    %187 = vector.broadcast %179 : vector<16x1xf32> to vector<16x32xf32>
    %188 = arith.subf %175, %187 : vector<16x32xf32>
    %cst_52 = arith.constant 9.99999974E-6 : f32
    %189 = vector.broadcast %cst_52 : f32 to vector<16x1xf32>
    %190 = arith.addf %186, %189 : vector<16x1xf32>
    %191 = math.rsqrt %190 : vector<16x1xf32>
    %192 = vector.broadcast %191 : vector<16x1xf32> to vector<16x32xf32>
    %193 = arith.mulf %188, %192 : vector<16x32xf32>
    %194 = vector.broadcast %9 : vector<1x32xf32> to vector<16x32xf32>
    %195 = arith.mulf %193, %194 : vector<16x32xf32>
    %196 = vector.broadcast %10 : vector<1x32xf32> to vector<16x32xf32>
    %197 = arith.addf %195, %196 : vector<16x32xf32>
    %c1 = arith.constant 1 : index
    %c0_53 = arith.constant 0 : index
    %c0_54 = arith.constant 0 : index
    %198 = vector.load %arg5[%c1, %c0_53, %c0_54] : memref<2x8x128xf32, #tpu.memory_space<vmem>>, vector<1x8x128xf32>
    %199 = vector.shape_cast %198 : vector<1x8x128xf32> to vector<8x128xf32>
    %200 = vector.extract_strided_slice %199 {offsets = [0, 0], sizes = [1, 96], strides = [1, 1]} : vector<8x128xf32> to vector<1x96xf32>
    %201 = vector.extract_strided_slice %199 {offsets = [1, 0], sizes = [1, 32], strides = [1, 1]} : vector<8x128xf32> to vector<1x32xf32>
    %202 = vector.extract_strided_slice %199 {offsets = [2, 0], sizes = [1, 32], strides = [1, 1]} : vector<8x128xf32> to vector<1x32xf32>
    %203 = vector.extract_strided_slice %199 {offsets = [3, 0], sizes = [1, 32], strides = [1, 1]} : vector<8x128xf32> to vector<1x32xf32>
    %204 = vector.extract_strided_slice %199 {offsets = [4, 0], sizes = [1, 64], strides = [1, 1]} : vector<8x128xf32> to vector<1x64xf32>
    %205 = vector.extract_strided_slice %199 {offsets = [5, 0], sizes = [1, 32], strides = [1, 1]} : vector<8x128xf32> to vector<1x32xf32>
    %206 = vector.extract_strided_slice %199 {offsets = [6, 0], sizes = [1, 32], strides = [1, 1]} : vector<8x128xf32> to vector<1x32xf32>
    %207 = vector.extract_strided_slice %199 {offsets = [7, 0], sizes = [1, 32], strides = [1, 1]} : vector<8x128xf32> to vector<1x32xf32>
    %c1_55 = arith.constant 1 : index
    %c0_56 = arith.constant 0 : index
    %c0_57 = arith.constant 0 : index
    %208 = vector.load %arg1[%c1_55, %c0_56, %c0_57] : memref<2x32x96xbf16, #tpu.memory_space<vmem>>, vector<1x32x96xbf16>
    %209 = vector.shape_cast %208 : vector<1x32x96xbf16> to vector<32x96xbf16>
    %210 = arith.truncf %197 : vector<16x32xf32> to vector<16x32xbf16>
    %cst_58 = arith.constant dense<0.000000e+00> : vector<16x96xf32>
    %211 = tpu.matmul %210, %209, %cst_58 {dimension_numbers = #tpu.dot_dimension_numbers<[1], [0], [0], [1], [0, 0, 1, 1], [], []>} : vector<16x32xbf16>, vector<32x96xbf16>, vector<16x96xf32> -> vector<16x96xf32>
    %212 = vector.broadcast %200 : vector<1x96xf32> to vector<16x96xf32>
    %213 = arith.addf %211, %212 : vector<16x96xf32>
    %214 = vector.extract_strided_slice %213 {offsets = [0, 0], sizes = [16, 32], strides = [1, 1]} : vector<16x96xf32> to vector<16x32xf32>
    %215 = vector.extract_strided_slice %213 {offsets = [0, 32], sizes = [16, 32], strides = [1, 1]} : vector<16x96xf32> to vector<16x32xf32>
    %216 = vector.extract_strided_slice %213 {offsets = [0, 64], sizes = [16, 32], strides = [1, 1]} : vector<16x96xf32> to vector<16x32xf32>
    %217 = vector.extract_strided_slice %214 {offsets = [0, 0], sizes = [16, 8], strides = [1, 1]} : vector<16x32xf32> to vector<16x8xf32>
    %218 = vector.shape_cast %217 : vector<16x8xf32> to vector<2x8x8xf32>
    %219 = vector.extract_strided_slice %215 {offsets = [0, 0], sizes = [16, 8], strides = [1, 1]} : vector<16x32xf32> to vector<16x8xf32>
    %220 = vector.shape_cast %219 : vector<16x8xf32> to vector<2x8x8xf32>
    %221 = vector.extract_strided_slice %216 {offsets = [0, 0], sizes = [16, 8], strides = [1, 1]} : vector<16x32xf32> to vector<16x8xf32>
    %222 = vector.shape_cast %221 : vector<16x8xf32> to vector<2x8x8xf32>
    %223 = arith.truncf %218 : vector<2x8x8xf32> to vector<2x8x8xbf16>
    %224 = arith.truncf %220 : vector<2x8x8xf32> to vector<2x8x8xbf16>
    "tpu.trace_start"() <{level = 10 : i32, message = "bqd,bkd->bqk"}> : () -> ()
    %cst_59 = arith.constant dense<0.000000e+00> : vector<2x8x8xf32>
    %225 = tpu.matmul %223, %224, %cst_59 {dimension_numbers = #tpu.dot_dimension_numbers<[2], [2], [1], [1], [0, 0, 0, 1, 1, 1], [0], [0]>} : vector<2x8x8xbf16>, vector<2x8x8xbf16>, vector<2x8x8xf32> -> vector<2x8x8xf32>
    "tpu.trace_stop"() : () -> ()
    %cst_60 = arith.constant 2.500000e-01 : f32
    %226 = vector.broadcast %cst_60 : f32 to vector<2x8x8xf32>
    %227 = arith.mulf %225, %226 : vector<2x8x8xf32>
    %cst_61 = arith.constant dense<0xFF800000> : vector<2x8xf32>
    %228 = vector.multi_reduction <maximumf>, %227, %cst_61 [2] : vector<2x8x8xf32> to vector<2x8xf32>
    %229 = vector.shape_cast %228 : vector<2x8xf32> to vector<2x8x1xf32>
    %230 = vector.broadcast %229 : vector<2x8x1xf32> to vector<2x8x8xf32>
    %231 = arith.subf %227, %230 : vector<2x8x8xf32>
    %232 = math.exp %231 : vector<2x8x8xf32>
    %cst_62 = arith.constant dense<0.000000e+00> : vector<2x8xf32>
    %233 = vector.multi_reduction <add>, %232, %cst_62 [2] : vector<2x8x8xf32> to vector<2x8xf32>
    %234 = vector.shape_cast %233 : vector<2x8xf32> to vector<2x8x1xf32>
    %235 = tpu.reciprocal %234 {approx = true} : vector<2x8x1xf32> -> vector<2x8x1xf32>
    %236 = vector.broadcast %235 : vector<2x8x1xf32> to vector<2x8x8xf32>
    %237 = arith.mulf %232, %236 : vector<2x8x8xf32>
    %238 = arith.truncf %237 : vector<2x8x8xf32> to vector<2x8x8xbf16>
    %239 = arith.truncf %222 : vector<2x8x8xf32> to vector<2x8x8xbf16>
    "tpu.trace_start"() <{level = 10 : i32, message = "bqk,bkd->bqd"}> : () -> ()
    %cst_63 = arith.constant dense<0.000000e+00> : vector<2x8x8xf32>
    %240 = tpu.matmul %238, %239, %cst_63 {dimension_numbers = #tpu.dot_dimension_numbers<[2], [1], [1], [2], [0, 0, 0, 1, 1, 2], [0], [0]>} : vector<2x8x8xbf16>, vector<2x8x8xbf16>, vector<2x8x8xf32> -> vector<2x8x8xf32>
    "tpu.trace_stop"() : () -> ()
    %241 = vector.shape_cast %240 : vector<2x8x8xf32> to vector<16x8xf32>
    %242 = vector.extract_strided_slice %214 {offsets = [0, 8], sizes = [16, 8], strides = [1, 1]} : vector<16x32xf32> to vector<16x8xf32>
    %243 = vector.shape_cast %242 : vector<16x8xf32> to vector<2x8x8xf32>
    %244 = vector.extract_strided_slice %215 {offsets = [0, 8], sizes = [16, 8], strides = [1, 1]} : vector<16x32xf32> to vector<16x8xf32>
    %245 = vector.shape_cast %244 : vector<16x8xf32> to vector<2x8x8xf32>
    %246 = vector.extract_strided_slice %216 {offsets = [0, 8], sizes = [16, 8], strides = [1, 1]} : vector<16x32xf32> to vector<16x8xf32>
    %247 = vector.shape_cast %246 : vector<16x8xf32> to vector<2x8x8xf32>
    %248 = arith.truncf %243 : vector<2x8x8xf32> to vector<2x8x8xbf16>
    %249 = arith.truncf %245 : vector<2x8x8xf32> to vector<2x8x8xbf16>
    "tpu.trace_start"() <{level = 10 : i32, message = "bqd,bkd->bqk"}> : () -> ()
    %cst_64 = arith.constant dense<0.000000e+00> : vector<2x8x8xf32>
    %250 = tpu.matmul %248, %249, %cst_64 {dimension_numbers = #tpu.dot_dimension_numbers<[2], [2], [1], [1], [0, 0, 0, 1, 1, 1], [0], [0]>} : vector<2x8x8xbf16>, vector<2x8x8xbf16>, vector<2x8x8xf32> -> vector<2x8x8xf32>
    "tpu.trace_stop"() : () -> ()
    %cst_65 = arith.constant 2.500000e-01 : f32
    %251 = vector.broadcast %cst_65 : f32 to vector<2x8x8xf32>
    %252 = arith.mulf %250, %251 : vector<2x8x8xf32>
    %cst_66 = arith.constant dense<0xFF800000> : vector<2x8xf32>
    %253 = vector.multi_reduction <maximumf>, %252, %cst_66 [2] : vector<2x8x8xf32> to vector<2x8xf32>
    %254 = vector.shape_cast %253 : vector<2x8xf32> to vector<2x8x1xf32>
    %255 = vector.broadcast %254 : vector<2x8x1xf32> to vector<2x8x8xf32>
    %256 = arith.subf %252, %255 : vector<2x8x8xf32>
    %257 = math.exp %256 : vector<2x8x8xf32>
    %cst_67 = arith.constant dense<0.000000e+00> : vector<2x8xf32>
    %258 = vector.multi_reduction <add>, %257, %cst_67 [2] : vector<2x8x8xf32> to vector<2x8xf32>
    %259 = vector.shape_cast %258 : vector<2x8xf32> to vector<2x8x1xf32>
    %260 = tpu.reciprocal %259 {approx = true} : vector<2x8x1xf32> -> vector<2x8x1xf32>
    %261 = vector.broadcast %260 : vector<2x8x1xf32> to vector<2x8x8xf32>
    %262 = arith.mulf %257, %261 : vector<2x8x8xf32>
    %263 = arith.truncf %262 : vector<2x8x8xf32> to vector<2x8x8xbf16>
    %264 = arith.truncf %247 : vector<2x8x8xf32> to vector<2x8x8xbf16>
    "tpu.trace_start"() <{level = 10 : i32, message = "bqk,bkd->bqd"}> : () -> ()
    %cst_68 = arith.constant dense<0.000000e+00> : vector<2x8x8xf32>
    %265 = tpu.matmul %263, %264, %cst_68 {dimension_numbers = #tpu.dot_dimension_numbers<[2], [1], [1], [2], [0, 0, 0, 1, 1, 2], [0], [0]>} : vector<2x8x8xbf16>, vector<2x8x8xbf16>, vector<2x8x8xf32> -> vector<2x8x8xf32>
    "tpu.trace_stop"() : () -> ()
    %266 = vector.shape_cast %265 : vector<2x8x8xf32> to vector<16x8xf32>
    %267 = vector.extract_strided_slice %214 {offsets = [0, 16], sizes = [16, 8], strides = [1, 1]} : vector<16x32xf32> to vector<16x8xf32>
    %268 = vector.shape_cast %267 : vector<16x8xf32> to vector<2x8x8xf32>
    %269 = vector.extract_strided_slice %215 {offsets = [0, 16], sizes = [16, 8], strides = [1, 1]} : vector<16x32xf32> to vector<16x8xf32>
    %270 = vector.shape_cast %269 : vector<16x8xf32> to vector<2x8x8xf32>
    %271 = vector.extract_strided_slice %216 {offsets = [0, 16], sizes = [16, 8], strides = [1, 1]} : vector<16x32xf32> to vector<16x8xf32>
    %272 = vector.shape_cast %271 : vector<16x8xf32> to vector<2x8x8xf32>
    %273 = arith.truncf %268 : vector<2x8x8xf32> to vector<2x8x8xbf16>
    %274 = arith.truncf %270 : vector<2x8x8xf32> to vector<2x8x8xbf16>
    "tpu.trace_start"() <{level = 10 : i32, message = "bqd,bkd->bqk"}> : () -> ()
    %cst_69 = arith.constant dense<0.000000e+00> : vector<2x8x8xf32>
    %275 = tpu.matmul %273, %274, %cst_69 {dimension_numbers = #tpu.dot_dimension_numbers<[2], [2], [1], [1], [0, 0, 0, 1, 1, 1], [0], [0]>} : vector<2x8x8xbf16>, vector<2x8x8xbf16>, vector<2x8x8xf32> -> vector<2x8x8xf32>
    "tpu.trace_stop"() : () -> ()
    %cst_70 = arith.constant 2.500000e-01 : f32
    %276 = vector.broadcast %cst_70 : f32 to vector<2x8x8xf32>
    %277 = arith.mulf %275, %276 : vector<2x8x8xf32>
    %cst_71 = arith.constant dense<0xFF800000> : vector<2x8xf32>
    %278 = vector.multi_reduction <maximumf>, %277, %cst_71 [2] : vector<2x8x8xf32> to vector<2x8xf32>
    %279 = vector.shape_cast %278 : vector<2x8xf32> to vector<2x8x1xf32>
    %280 = vector.broadcast %279 : vector<2x8x1xf32> to vector<2x8x8xf32>
    %281 = arith.subf %277, %280 : vector<2x8x8xf32>
    %282 = math.exp %281 : vector<2x8x8xf32>
    %cst_72 = arith.constant dense<0.000000e+00> : vector<2x8xf32>
    %283 = vector.multi_reduction <add>, %282, %cst_72 [2] : vector<2x8x8xf32> to vector<2x8xf32>
    %284 = vector.shape_cast %283 : vector<2x8xf32> to vector<2x8x1xf32>
    %285 = tpu.reciprocal %284 {approx = true} : vector<2x8x1xf32> -> vector<2x8x1xf32>
    %286 = vector.broadcast %285 : vector<2x8x1xf32> to vector<2x8x8xf32>
    %287 = arith.mulf %282, %286 : vector<2x8x8xf32>
    %288 = arith.truncf %287 : vector<2x8x8xf32> to vector<2x8x8xbf16>
    %289 = arith.truncf %272 : vector<2x8x8xf32> to vector<2x8x8xbf16>
    "tpu.trace_start"() <{level = 10 : i32, message = "bqk,bkd->bqd"}> : () -> ()
    %cst_73 = arith.constant dense<0.000000e+00> : vector<2x8x8xf32>
    %290 = tpu.matmul %288, %289, %cst_73 {dimension_numbers = #tpu.dot_dimension_numbers<[2], [1], [1], [2], [0, 0, 0, 1, 1, 2], [0], [0]>} : vector<2x8x8xbf16>, vector<2x8x8xbf16>, vector<2x8x8xf32> -> vector<2x8x8xf32>
    "tpu.trace_stop"() : () -> ()
    %291 = vector.shape_cast %290 : vector<2x8x8xf32> to vector<16x8xf32>
    %292 = vector.extract_strided_slice %214 {offsets = [0, 24], sizes = [16, 8], strides = [1, 1]} : vector<16x32xf32> to vector<16x8xf32>
    %293 = vector.shape_cast %292 : vector<16x8xf32> to vector<2x8x8xf32>
    %294 = vector.extract_strided_slice %215 {offsets = [0, 24], sizes = [16, 8], strides = [1, 1]} : vector<16x32xf32> to vector<16x8xf32>
    %295 = vector.shape_cast %294 : vector<16x8xf32> to vector<2x8x8xf32>
    %296 = vector.extract_strided_slice %216 {offsets = [0, 24], sizes = [16, 8], strides = [1, 1]} : vector<16x32xf32> to vector<16x8xf32>
    %297 = vector.shape_cast %296 : vector<16x8xf32> to vector<2x8x8xf32>
    %298 = arith.truncf %293 : vector<2x8x8xf32> to vector<2x8x8xbf16>
    %299 = arith.truncf %295 : vector<2x8x8xf32> to vector<2x8x8xbf16>
    "tpu.trace_start"() <{level = 10 : i32, message = "bqd,bkd->bqk"}> : () -> ()
    %cst_74 = arith.constant dense<0.000000e+00> : vector<2x8x8xf32>
    %300 = tpu.matmul %298, %299, %cst_74 {dimension_numbers = #tpu.dot_dimension_numbers<[2], [2], [1], [1], [0, 0, 0, 1, 1, 1], [0], [0]>} : vector<2x8x8xbf16>, vector<2x8x8xbf16>, vector<2x8x8xf32> -> vector<2x8x8xf32>
    "tpu.trace_stop"() : () -> ()
    %cst_75 = arith.constant 2.500000e-01 : f32
    %301 = vector.broadcast %cst_75 : f32 to vector<2x8x8xf32>
    %302 = arith.mulf %300, %301 : vector<2x8x8xf32>
    %cst_76 = arith.constant dense<0xFF800000> : vector<2x8xf32>
    %303 = vector.multi_reduction <maximumf>, %302, %cst_76 [2] : vector<2x8x8xf32> to vector<2x8xf32>
    %304 = vector.shape_cast %303 : vector<2x8xf32> to vector<2x8x1xf32>
    %305 = vector.broadcast %304 : vector<2x8x1xf32> to vector<2x8x8xf32>
    %306 = arith.subf %302, %305 : vector<2x8x8xf32>
    %307 = math.exp %306 : vector<2x8x8xf32>
    %cst_77 = arith.constant dense<0.000000e+00> : vector<2x8xf32>
    %308 = vector.multi_reduction <add>, %307, %cst_77 [2] : vector<2x8x8xf32> to vector<2x8xf32>
    %309 = vector.shape_cast %308 : vector<2x8xf32> to vector<2x8x1xf32>
    %310 = tpu.reciprocal %309 {approx = true} : vector<2x8x1xf32> -> vector<2x8x1xf32>
    %311 = vector.broadcast %310 : vector<2x8x1xf32> to vector<2x8x8xf32>
    %312 = arith.mulf %307, %311 : vector<2x8x8xf32>
    %313 = arith.truncf %312 : vector<2x8x8xf32> to vector<2x8x8xbf16>
    %314 = arith.truncf %297 : vector<2x8x8xf32> to vector<2x8x8xbf16>
    "tpu.trace_start"() <{level = 10 : i32, message = "bqk,bkd->bqd"}> : () -> ()
    %cst_78 = arith.constant dense<0.000000e+00> : vector<2x8x8xf32>
    %315 = tpu.matmul %313, %314, %cst_78 {dimension_numbers = #tpu.dot_dimension_numbers<[2], [1], [1], [2], [0, 0, 0, 1, 1, 2], [0], [0]>} : vector<2x8x8xbf16>, vector<2x8x8xbf16>, vector<2x8x8xf32> -> vector<2x8x8xf32>
    "tpu.trace_stop"() : () -> ()
    %316 = vector.shape_cast %315 : vector<2x8x8xf32> to vector<16x8xf32>
    %317 = tpu.concatenate %241, %266, %291, %316 in 1 : vector<16x8xf32>, vector<16x8xf32>, vector<16x8xf32>, vector<16x8xf32> -> vector<16x32xf32>
    %c1_79 = arith.constant 1 : index
    %c0_80 = arith.constant 0 : index
    %c0_81 = arith.constant 0 : index
    %318 = vector.load %arg2[%c1_79, %c0_80, %c0_81] : memref<2x32x32xbf16, #tpu.memory_space<vmem>>, vector<1x32x32xbf16>
    %319 = vector.shape_cast %318 : vector<1x32x32xbf16> to vector<32x32xbf16>
    %320 = arith.truncf %317 : vector<16x32xf32> to vector<16x32xbf16>
    %cst_82 = arith.constant dense<0.000000e+00> : vector<16x32xf32>
    %321 = tpu.matmul %320, %319, %cst_82 {dimension_numbers = #tpu.dot_dimension_numbers<[1], [0], [0], [1], [0, 0, 1, 1], [], []>} : vector<16x32xbf16>, vector<32x32xbf16>, vector<16x32xf32> -> vector<16x32xf32>
    %322 = vector.broadcast %201 : vector<1x32xf32> to vector<16x32xf32>
    %323 = arith.addf %321, %322 : vector<16x32xf32>
    %324 = arith.addf %323, %197 : vector<16x32xf32>
    %cst_83 = arith.constant dense<0.000000e+00> : vector<16xf32>
    %325 = vector.multi_reduction <add>, %324, %cst_83 [1] : vector<16x32xf32> to vector<16xf32>
    %326 = vector.shape_cast %325 : vector<16xf32> to vector<16x1xf32>
    %cst_84 = arith.constant 3.200000e+01 : f32
    %327 = vector.broadcast %cst_84 : f32 to vector<16x1xf32>
    %328 = arith.divf %326, %327 : vector<16x1xf32>
    %329 = vector.broadcast %328 : vector<16x1xf32> to vector<16x32xf32>
    %330 = arith.subf %324, %329 : vector<16x32xf32>
    %331 = arith.mulf %330, %330 : vector<16x32xf32>
    %cst_85 = arith.constant dense<0.000000e+00> : vector<16xf32>
    %332 = vector.multi_reduction <add>, %331, %cst_85 [1] : vector<16x32xf32> to vector<16xf32>
    %333 = vector.shape_cast %332 : vector<16xf32> to vector<16x1xf32>
    %cst_86 = arith.constant 3.200000e+01 : f32
    %334 = vector.broadcast %cst_86 : f32 to vector<16x1xf32>
    %335 = arith.divf %333, %334 : vector<16x1xf32>
    %336 = vector.broadcast %328 : vector<16x1xf32> to vector<16x32xf32>
    %337 = arith.subf %324, %336 : vector<16x32xf32>
    %cst_87 = arith.constant 9.99999974E-6 : f32
    %338 = vector.broadcast %cst_87 : f32 to vector<16x1xf32>
    %339 = arith.addf %335, %338 : vector<16x1xf32>
    %340 = math.rsqrt %339 : vector<16x1xf32>
    %341 = vector.broadcast %340 : vector<16x1xf32> to vector<16x32xf32>
    %342 = arith.mulf %337, %341 : vector<16x32xf32>
    %343 = vector.broadcast %202 : vector<1x32xf32> to vector<16x32xf32>
    %344 = arith.mulf %342, %343 : vector<16x32xf32>
    %345 = vector.broadcast %203 : vector<1x32xf32> to vector<16x32xf32>
    %346 = arith.addf %344, %345 : vector<16x32xf32>
    %c1_88 = arith.constant 1 : index
    %c0_89 = arith.constant 0 : index
    %c0_90 = arith.constant 0 : index
    %347 = vector.load %arg3[%c1_88, %c0_89, %c0_90] : memref<2x32x64xbf16, #tpu.memory_space<vmem>>, vector<1x32x64xbf16>
    %348 = vector.shape_cast %347 : vector<1x32x64xbf16> to vector<32x64xbf16>
    %349 = arith.truncf %346 : vector<16x32xf32> to vector<16x32xbf16>
    %cst_91 = arith.constant dense<0.000000e+00> : vector<16x64xf32>
    %350 = tpu.matmul %349, %348, %cst_91 {dimension_numbers = #tpu.dot_dimension_numbers<[1], [0], [0], [1], [0, 0, 1, 1], [], []>} : vector<16x32xbf16>, vector<32x64xbf16>, vector<16x64xf32> -> vector<16x64xf32>
    %351 = vector.broadcast %204 : vector<1x64xf32> to vector<16x64xf32>
    %352 = arith.addf %350, %351 : vector<16x64xf32>
    %cst_92 = arith.constant 5.000000e-01 : f32
    %353 = vector.broadcast %cst_92 : f32 to vector<16x64xf32>
    %354 = arith.mulf %353, %352 : vector<16x64xf32>
    %cst_93 = arith.constant 4.471500e-02 : f32
    %355 = vector.broadcast %cst_93 : f32 to vector<16x64xf32>
    %356 = arith.mulf %355, %352 : vector<16x64xf32>
    %357 = arith.mulf %356, %352 : vector<16x64xf32>
    %358 = arith.mulf %357, %352 : vector<16x64xf32>
    %359 = arith.addf %352, %358 : vector<16x64xf32>
    %cst_94 = arith.constant 0.797884583 : f32
    %360 = vector.broadcast %cst_94 : f32 to vector<16x64xf32>
    %361 = arith.mulf %360, %359 : vector<16x64xf32>
    %362 = math.tanh %361 : vector<16x64xf32>
    %cst_95 = arith.constant 1.000000e+00 : f32
    %363 = vector.broadcast %cst_95 : f32 to vector<16x64xf32>
    %364 = arith.addf %363, %362 : vector<16x64xf32>
    %365 = arith.mulf %354, %364 : vector<16x64xf32>
    %c1_96 = arith.constant 1 : index
    %c0_97 = arith.constant 0 : index
    %c0_98 = arith.constant 0 : index
    %366 = vector.load %arg4[%c1_96, %c0_97, %c0_98] : memref<2x64x32xbf16, #tpu.memory_space<vmem>>, vector<1x64x32xbf16>
    %367 = vector.shape_cast %366 : vector<1x64x32xbf16> to vector<64x32xbf16>
    %368 = arith.truncf %365 : vector<16x64xf32> to vector<16x64xbf16>
    %cst_99 = arith.constant dense<0.000000e+00> : vector<16x32xf32>
    %369 = tpu.matmul %368, %367, %cst_99 {dimension_numbers = #tpu.dot_dimension_numbers<[1], [0], [0], [1], [0, 0, 1, 1], [], []>} : vector<16x64xbf16>, vector<64x32xbf16>, vector<16x32xf32> -> vector<16x32xf32>
    %370 = vector.broadcast %205 : vector<1x32xf32> to vector<16x32xf32>
    %371 = arith.addf %369, %370 : vector<16x32xf32>
    %372 = arith.addf %346, %371 : vector<16x32xf32>
    %cst_100 = arith.constant dense<0.000000e+00> : vector<16xf32>
    %373 = vector.multi_reduction <add>, %372, %cst_100 [1] : vector<16x32xf32> to vector<16xf32>
    %374 = vector.shape_cast %373 : vector<16xf32> to vector<16x1xf32>
    %cst_101 = arith.constant 3.200000e+01 : f32
    %375 = vector.broadcast %cst_101 : f32 to vector<16x1xf32>
    %376 = arith.divf %374, %375 : vector<16x1xf32>
    %377 = vector.broadcast %376 : vector<16x1xf32> to vector<16x32xf32>
    %378 = arith.subf %372, %377 : vector<16x32xf32>
    %379 = arith.mulf %378, %378 : vector<16x32xf32>
    %cst_102 = arith.constant dense<0.000000e+00> : vector<16xf32>
    %380 = vector.multi_reduction <add>, %379, %cst_102 [1] : vector<16x32xf32> to vector<16xf32>
    %381 = vector.shape_cast %380 : vector<16xf32> to vector<16x1xf32>
    %cst_103 = arith.constant 3.200000e+01 : f32
    %382 = vector.broadcast %cst_103 : f32 to vector<16x1xf32>
    %383 = arith.divf %381, %382 : vector<16x1xf32>
    %384 = vector.broadcast %376 : vector<16x1xf32> to vector<16x32xf32>
    %385 = arith.subf %372, %384 : vector<16x32xf32>
    %cst_104 = arith.constant 9.99999974E-6 : f32
    %386 = vector.broadcast %cst_104 : f32 to vector<16x1xf32>
    %387 = arith.addf %383, %386 : vector<16x1xf32>
    %388 = math.rsqrt %387 : vector<16x1xf32>
    %389 = vector.broadcast %388 : vector<16x1xf32> to vector<16x32xf32>
    %390 = arith.mulf %385, %389 : vector<16x32xf32>
    %391 = vector.broadcast %206 : vector<1x32xf32> to vector<16x32xf32>
    %392 = arith.mulf %390, %391 : vector<16x32xf32>
    %393 = vector.broadcast %207 : vector<1x32xf32> to vector<16x32xf32>
    %394 = arith.addf %392, %393 : vector<16x32xf32>
    %c0_105 = arith.constant 0 : index
    %c0_106 = arith.constant 0 : index
    %395 = vector.load %arg6[%c0_105, %c0_106] : memref<16x32xf32, #tpu.memory_space<vmem>>, vector<16x32xf32>
    tpu.vector_store %arg6[%c0_105, %c0_106], %394 {strides = array<i32>} : memref<16x32xf32, #tpu.memory_space<vmem>>, vector<16x32xf32>,
    return
  }
}

</mosaic_0001>

<llo_original>
// kernel: tpu_custom_call.1
$region0: #{tpu_custom_call.1}
  #allocation0 [shape = 'u32[]', space=smem, size = 0x4, offset = 0x4, fixed_abs, tag = 'smem constant byte address 0x4 - core index']
  #allocation1 [shape = 'u32[72,128]{1,0:T(1,128)}', space=vmem, size = 0x9000, scoped, tag = 'internal scratch']
  %s0 = inlined_call_operand.hbm [shape: f32[16,32], index: 0, kind: input, shape index: {}]
  %s1 = inlined_call_operand.vmem [shape: bf16[2,32,96], index: 1, kind: input, shape index: {}]
  %s2 = inlined_call_operand.vmem [shape: bf16[2,32,32], index: 2, kind: input, shape index: {}]
  %s3 = inlined_call_operand.vmem [shape: bf16[2,32,64], index: 3, kind: input, shape index: {}]
  %s4 = inlined_call_operand.vmem [shape: bf16[2,64,32], index: 4, kind: input, shape index: {}]
  %s5 = inlined_call_operand.hbm [shape: f32[2,8,128], index: 5, kind: input, shape index: {}]
  %s6 = inlined_call_operand.hbm [shape: f32[16,32], index: 6, kind: output, shape index: {}]
  %s7 = sld [smem:[#allocation0]]
  $region42: #{tpu_custom_call.1} parent=0
    _
  %s9 = ssub.s32 1, %s7
  %s10 = scalar_select 0, %s9, %s7
  $region1: #{tpu_custom_call.1} parent=0
    #allocation2 [shape = 'u8[8192]{0}', space=vmem, size = 0x2000, scoped, tag = 'input window, operand 0, single buffered']
    #allocation3 [shape = 's32[1]{0}', space=sflag, size = 0x4, scoped, tag = 'scoped memory for tpu_custom_call.1']
    #allocation4 [shape = 's32[1]{0}', space=sflag, size = 0x4, scoped, tag = 'scoped memory for tpu_custom_call.1']
    #allocation5 [shape = 'u8[8192]{0}', space=vmem, size = 0x2000, scoped, tag = 'input window, operand 5, single buffered']
    #allocation6 [shape = 's32[1]{0}', space=sflag, size = 0x4, scoped, tag = 'scoped memory for tpu_custom_call.1']
    #allocation7 [shape = 'u8[8192]{0}', space=vmem, size = 0x2000, scoped, tag = 'output window, operand 0, single buffered']
    %11 = vsyncpa [#allocation3], 0
    %12 = vsyncpa [#allocation6], 0
    %13 = vsyncpa [#allocation4], 0
    // Predicated region
    $region2: #{tpu_custom_call.1} parent=1 // pred_check
      _
    $region3: #{tpu_custom_call.1} parent=1 // pred_check_branch
      %15 = sbr.rel (0) target = $region5
    $region4: #{tpu_custom_call.1} parent=1 // pred_region
      %17 = vsyncadd [#allocation3], 0
      %s18 = sshll.u32 %s0, 4
      %s19 = int_to_ptr.hbm [resolvable:$true] %s18
      %s20 = sshll.u32 [#allocation2], 4
      %s21 = int_to_ptr.vmem [resolvable:$true] %s20
      %26 = dma.hbm_to_vmem [thread:$0]  %s19, 256, %s21, [#allocation3], 128, 128, 8
    $region5: #{tpu_custom_call.1} parent=1 // pred_fallthru
      _
    // Predicated region
    $region6: #{tpu_custom_call.1} parent=1 // pred_check
      _
    $region7: #{tpu_custom_call.1} parent=1 // pred_check_branch
      %28 = sbr.rel (0) target = $region9
    $region8: #{tpu_custom_call.1} parent=1 // pred_region
      _
    $region9: #{tpu_custom_call.1} parent=1 // pred_fallthru
      _
    // Predicated region
    $region10: #{tpu_custom_call.1} parent=1 // pred_check
      _
    $region11: #{tpu_custom_call.1} parent=1 // pred_check_branch
      %30 = sbr.rel (0) target = $region13
    $region12: #{tpu_custom_call.1} parent=1 // pred_region
      _
    $region13: #{tpu_custom_call.1} parent=1 // pred_fallthru
      _
    // Predicated region
    $region14: #{tpu_custom_call.1} parent=1 // pred_check
      _
    $region15: #{tpu_custom_call.1} parent=1 // pred_check_branch
      %32 = sbr.rel (0) target = $region17
    $region16: #{tpu_custom_call.1} parent=1 // pred_region
      _
    $region17: #{tpu_custom_call.1} parent=1 // pred_fallthru
      _
    // Predicated region
    $region18: #{tpu_custom_call.1} parent=1 // pred_check
      _
    $region19: #{tpu_custom_call.1} parent=1 // pred_check_branch
      %34 = sbr.rel (0) target = $region21
    $region20: #{tpu_custom_call.1} parent=1 // pred_region
      _
    $region21: #{tpu_custom_call.1} parent=1 // pred_fallthru
      _
    // Predicated region
    $region22: #{tpu_custom_call.1} parent=1 // pred_check
      _
    $region23: #{tpu_custom_call.1} parent=1 // pred_check_branch
      %36 = sbr.rel (0) target = $region25
    $region24: #{tpu_custom_call.1} parent=1 // pred_region
      %38 = vsyncadd [#allocation6], 0
      %s39 = sshll.u32 %s5, 4
      %s40 = int_to_ptr.hbm [resolvable:$true] %s39
      %s41 = sshll.u32 [#allocation5], 4
      %s42 = int_to_ptr.vmem [resolvable:$true] %s41
      %47 = dma.hbm_to_vmem [thread:$0]  %s40, 256, %s42, [#allocation6], 128, 128, 8
    $region25: #{tpu_custom_call.1} parent=1 // pred_fallthru
      _
    // Predicated region
    $region26: #{tpu_custom_call.1} parent=1 // pred_check
      _
    $region27: #{tpu_custom_call.1} parent=1 // pred_check_branch
      %49 = sbr.rel (0) target = $region29
    $region28: #{tpu_custom_call.1} parent=1 // pred_region
      %51 = dma.done [#allocation3], 256
    $region29: #{tpu_custom_call.1} parent=1 // pred_fallthru
      _
    // Predicated region
    $region30: #{tpu_custom_call.1} parent=1 // pred_check
      _
    $region31: #{tpu_custom_call.1} parent=1 // pred_check_branch
      %53 = sbr.rel (0) target = $region33
    $region32: #{tpu_custom_call.1} parent=1 // pred_region
      %55 = dma.done [#allocation6], 256
    $region33: #{tpu_custom_call.1} parent=1 // pred_fallthru
      _
    %v57 = vld [vmem:[#allocation2] sm:$0xff]
    %v58 = vld [vmem:[#allocation2 + $0x8] sm:$0xff]
    %v59 = vld [vmem:[#allocation5] sm:$0xff]
    %v60 = vld [vmem:[%s1] sm:$0xf]
    %v61 = vld [vmem:[%s1 + $0x4] sm:$0xf]
    %v62 = vld [vmem:[%s1 + $0x8] sm:$0xf]
    %v63 = vld [vmem:[%s1 + $0xc] sm:$0xf]
    %v64 = vpack.c.bf16 %v58, %v57
    %v65 = vperm.slane %v59, 0
    %v70 = vunpack.c.l.b16 %v60
    %v71 = vunpack.c.l.b16 %v61
    %v72 = vunpack.c.l.b16 %v62
    %v73 = vunpack.c.l.b16 %v63
    %v74 = vpack.c.b16 %v71, %v70
    %v75 = vpack.c.b16 %v73, %v72
    %vm78 = vcmask 261120
    %v80 = vsel %vm78, %v64, 0
    %82 = vmatpush.bf16.msra.mxu0 0
    %83 = vmatpush.bf16.msra.mxu0 0
    %84 = vmatpush.bf16.msra.mxu0 0
    %85 = vmatpush.bf16.msra.mxu0 0
    %86 = vmatpush.bf16.msra.mxu0 0
    %87 = vmatpush.bf16.msra.mxu0 0
    %88 = vmatpush.bf16.msra.mxu0 %v75
    %89 = vmatpush.bf16.msra.mxu0 %v74
    %90 = vmatmul.bf16.gmra.mxu0 %v80
    %v91 = vpop.f32.mrf.mxu0
    %v92 = vadd.f32 %v65, %v91
    %v93 = vpop.f32.mrf.mxu0
    %v94 = vadd.f32 %v65, %v93
    %95 = vdwg.mxu0
    %v96 = vpack.c.bf16 %v92, %v92
    %v97 = vpack.c.bf16 %v94, %v94
    %v99 = vunpack.c.l.b16 %v96
    %v100 = vpack.c.b16 %v99, %v99
    %101 = vrot.lane.b32.xlu0 %v100, 96
    %v102 = vpop.permute.xlu0 %101
    %vm103 = vcmask 64512
    %v105 = vsel %vm103, %v96, 0
    %v108 = vsel %vm103, %v102, 0
    %110 = vmatpush.bf16.xpose.msra.mxu0 0
    %111 = vmatpush.bf16.xpose.msra.mxu0 0
    %112 = vmatpush.bf16.xpose.msra.mxu0 0
    %113 = vmatpush.bf16.xpose.msra.mxu0 0
    %114 = vmatpush.bf16.xpose.msra.mxu0 0
    %115 = vmatpush.bf16.xpose.msra.mxu0 0
    %116 = vmatpush.bf16.xpose.msra.mxu0 0
    %117 = vmatpush.bf16.xpose.msra.mxu0 %v108
    %118 = vmatmul.bf16.gmra.mxu0 %v105
    %v119 = vpop.f32.mrf.mxu0
    %v120 = vadd.f32 0.0, %v119
    %v121 = vpop.f32.mrf.mxu0
    %122 = vdwg.mxu0
    %v124 = vunpack.c.l.b16 %v97
    %v125 = vpack.c.b16 %v124, %v124
    %126 = vrot.lane.b32.xlu0 %v125, 96
    %v127 = vpop.permute.xlu0 %126
    %v129 = vsel %vm103, %v97, 0
    %v132 = vsel %vm103, %v127, 0
    %134 = vmatpush.bf16.xpose.msra.mxu0 0
    %135 = vmatpush.bf16.xpose.msra.mxu0 0
    %136 = vmatpush.bf16.xpose.msra.mxu0 0
    %137 = vmatpush.bf16.xpose.msra.mxu0 0
    %138 = vmatpush.bf16.xpose.msra.mxu0 0
    %139 = vmatpush.bf16.xpose.msra.mxu0 0
    %140 = vmatpush.bf16.xpose.msra.mxu0 0
    %141 = vmatpush.bf16.xpose.msra.mxu0 %v132
    %142 = vmatmul.bf16.gmra.mxu0 %v129
    %v143 = vpop.f32.mrf.mxu0
    %v144 = vadd.f32 0.0, %v143
    %v145 = vpop.f32.mrf.mxu0
    %146 = vdwg.mxu0
    %v147 = vmul.f32 %v120, 0.25
    %v148 = vmul.f32 %v144, 0.25
    %v149 = vsel %vm103, %v147, -inf
    %150 = vmax.xlane.f32.xlu0 %v149
    %v151 = vpop.xlane.xlu0 %150
    %v152 = vsel %vm103, %v148, -inf
    %153 = vmax.xlane.f32.xlu0 %v152
    %v154 = vpop.xlane.xlu0 %153
    %v155 = vsub.f32 %v147, %v151
    %v156 = vsub.f32 %v148, %v154
    %v157 = vmul.f32 %v155, 1.442695
    %v158 = vpow.pop %v157
    %v159 = vmul.f32 %v156, 1.442695
    %v160 = vpow.pop %v159
    %v161 = vsel %vm103, %v158, 0.0
    %162 = vadd.xlane.f32.xlu0 %v161
    %v163 = vpop.xlane.xlu0 %162
    %v164 = vsel %vm103, %v160, 0.0
    %165 = vadd.xlane.f32.xlu0 %v164
    %v166 = vpop.xlane.xlu0 %165
    %v167 = vrcp.pop %v163
    %v168 = vrcp.pop %v166
    %v169 = vmul.f32 %v158, %v167
    %v170 = vmul.f32 %v160, %v168
    %v171 = vpack.c.bf16 %v169, %v169
    %v172 = vpack.c.bf16 %v170, %v170
    %173 = vrot.lane.b32.xlu0 %v100, 64
    %v174 = vpop.permute.xlu0 %173
    %v176 = vsel %vm103, %v171, 0
    %vm178 = vcmask 1043456
    %v180 = vsel %vm178, %v174, 0
    %182 = vmatpush.bf16.msra.mxu0 0
    %183 = vmatpush.bf16.msra.mxu0 0
    %184 = vmatpush.bf16.msra.mxu0 0
    %185 = vmatpush.bf16.msra.mxu0 0
    %186 = vmatpush.bf16.msra.mxu0 0
    %187 = vmatpush.bf16.msra.mxu0 0
    %188 = vmatpush.bf16.msra.mxu0 0
    %189 = vmatpush.bf16.msra.mxu0 %v180
    %190 = vmatmul.bf16.gmra.mxu0 %v176
    %v191 = vpop.f32.mrf.mxu0
    %v192 = vadd.f32 0.0, %v191
    %v193 = vpop.f32.mrf.mxu0
    %194 = vdwg.mxu0
    %195 = vrot.lane.b32.xlu0 %v125, 64
    %v196 = vpop.permute.xlu0 %195
    %v198 = vsel %vm103, %v172, 0
    %v201 = vsel %vm178, %v196, 0
    %203 = vmatpush.bf16.msra.mxu0 0
    %204 = vmatpush.bf16.msra.mxu0 0
    %205 = vmatpush.bf16.msra.mxu0 0
    %206 = vmatpush.bf16.msra.mxu0 0
    %207 = vmatpush.bf16.msra.mxu0 0
    %208 = vmatpush.bf16.msra.mxu0 0
    %209 = vmatpush.bf16.msra.mxu0 0
    %210 = vmatpush.bf16.msra.mxu0 %v201
    %211 = vmatmul.bf16.gmra.mxu0 %v198
    %v212 = vpop.f32.mrf.mxu0
    %v213 = vadd.f32 0.0, %v212
    %v214 = vpop.f32.mrf.mxu0
    %215 = vdwg.mxu0
    %216 = vrot.lane.b32.xlu0 %v100, 120
    %v217 = vpop.permute.xlu0 %216
    %218 = vrot.lane.b32.xlu0 %v100, 88
    %v219 = vpop.permute.xlu0 %218
    %v221 = vsel %vm103, %v217, 0
    %v224 = vsel %vm103, %v219, 0
    %226 = vmatpush.bf16.xpose.msra.mxu0 0
    %227 = vmatpush.bf16.xpose.msra.mxu0 0
    %228 = vmatpush.bf16.xpose.msra.mxu0 0
    %229 = vmatpush.bf16.xpose.msra.mxu0 0
    %230 = vmatpush.bf16.xpose.msra.mxu0 0
    %231 = vmatpush.bf16.xpose.msra.mxu0 0
    %232 = vmatpush.bf16.xpose.msra.mxu0 0
    %233 = vmatpush.bf16.xpose.msra.mxu0 %v224
    %234 = vmatmul.bf16.gmra.mxu0 %v221
    %v235 = vpop.f32.mrf.mxu0
    %v236 = vadd.f32 0.0, %v235
    %v237 = vpop.f32.mrf.mxu0
    %238 = vdwg.mxu0
    %239 = vrot.lane.b32.xlu0 %v125, 120
    %v240 = vpop.permute.xlu0 %239
    %241 = vrot.lane.b32.xlu0 %v125, 88
    %v242 = vpop.permute.xlu0 %241
    %v244 = vsel %vm103, %v240, 0
    %v247 = vsel %vm103, %v242, 0
    %249 = vmatpush.bf16.xpose.msra.mxu0 0
    %250 = vmatpush.bf16.xpose.msra.mxu0 0
    %251 = vmatpush.bf16.xpose.msra.mxu0 0
    %252 = vmatpush.bf16.xpose.msra.mxu0 0
    %253 = vmatpush.bf16.xpose.msra.mxu0 0
    %254 = vmatpush.bf16.xpose.msra.mxu0 0
    %255 = vmatpush.bf16.xpose.msra.mxu0 0
    %256 = vmatpush.bf16.xpose.msra.mxu0 %v247
    %257 = vmatmul.bf16.gmra.mxu0 %v244
    %v258 = vpop.f32.mrf.mxu0
    %v259 = vadd.f32 0.0, %v258
    %v260 = vpop.f32.mrf.mxu0
    %261 = vdwg.mxu0
    %v262 = vmul.f32 %v236, 0.25
    %v263 = vmul.f32 %v259, 0.25
    %v264 = vsel %vm103, %v262, -inf
    %265 = vmax.xlane.f32.xlu0 %v264
    %v266 = vpop.xlane.xlu0 %265
    %v267 = vsel %vm103, %v263, -inf
    %268 = vmax.xlane.f32.xlu0 %v267
    %v269 = vpop.xlane.xlu0 %268
    %v270 = vsub.f32 %v262, %v266
    %v271 = vsub.f32 %v263, %v269
    %v272 = vmul.f32 %v270, 1.442695
    %v273 = vpow.pop %v272
    %v274 = vmul.f32 %v271, 1.442695
    %v275 = vpow.pop %v274
    %v276 = vsel %vm103, %v273, 0.0
    %277 = vadd.xlane.f32.xlu0 %v276
    %v278 = vpop.xlane.xlu0 %277
    %v279 = vsel %vm103, %v275, 0.0
    %280 = vadd.xlane.f32.xlu0 %v279
    %v281 = vpop.xlane.xlu0 %280
    %v282 = vrcp.pop %v278
    %v283 = vrcp.pop %v281
    %v284 = vmul.f32 %v273, %v282
    %v285 = vmul.f32 %v275, %v283
    %v286 = vpack.c.bf16 %v284, %v284
    %v287 = vpack.c.bf16 %v285, %v285
    %288 = vrot.lane.b32.xlu0 %v100, 56
    %v289 = vpop.permute.xlu0 %288
    %v291 = vsel %vm103, %v286, 0
    %v294 = vsel %vm178, %v289, 0
    %296 = vmatpush.bf16.msra.mxu0 0
    %297 = vmatpush.bf16.msra.mxu0 0
    %298 = vmatpush.bf16.msra.mxu0 0
    %299 = vmatpush.bf16.msra.mxu0 0
    %300 = vmatpush.bf16.msra.mxu0 0
    %301 = vmatpush.bf16.msra.mxu0 0
    %302 = vmatpush.bf16.msra.mxu0 0
    %303 = vmatpush.bf16.msra.mxu0 %v294
    %304 = vmatmul.bf16.gmra.mxu0 %v291
    %v305 = vpop.f32.mrf.mxu0
    %v306 = vadd.f32 0.0, %v305
    %v307 = vpop.f32.mrf.mxu0
    %308 = vdwg.mxu0
    %309 = vrot.lane.b32.xlu0 %v125, 56
    %v310 = vpop.permute.xlu0 %309
    %v312 = vsel %vm103, %v287, 0
    %v315 = vsel %vm178, %v310, 0
    %317 = vmatpush.bf16.msra.mxu0 0
    %318 = vmatpush.bf16.msra.mxu0 0
    %319 = vmatpush.bf16.msra.mxu0 0
    %320 = vmatpush.bf16.msra.mxu0 0
    %321 = vmatpush.bf16.msra.mxu0 0
    %322 = vmatpush.bf16.msra.mxu0 0
    %323 = vmatpush.bf16.msra.mxu0 0
    %324 = vmatpush.bf16.msra.mxu0 %v315
    %325 = vmatmul.bf16.gmra.mxu0 %v312
    %v326 = vpop.f32.mrf.mxu0
    %v327 = vadd.f32 0.0, %v326
    %v328 = vpop.f32.mrf.mxu0
    %329 = vdwg.mxu0
    %330 = vrot.lane.b32.xlu0 %v100, 112
    %v331 = vpop.permute.xlu0 %330
    %332 = vrot.lane.b32.xlu0 %v100, 80
    %v333 = vpop.permute.xlu0 %332
    %v335 = vsel %vm103, %v331, 0
    %v338 = vsel %vm103, %v333, 0
    %340 = vmatpush.bf16.xpose.msra.mxu0 0
    %341 = vmatpush.bf16.xpose.msra.mxu0 0
    %342 = vmatpush.bf16.xpose.msra.mxu0 0
    %343 = vmatpush.bf16.xpose.msra.mxu0 0
    %344 = vmatpush.bf16.xpose.msra.mxu0 0
    %345 = vmatpush.bf16.xpose.msra.mxu0 0
    %346 = vmatpush.bf16.xpose.msra.mxu0 0
    %347 = vmatpush.bf16.xpose.msra.mxu0 %v338
    %348 = vmatmul.bf16.gmra.mxu0 %v335
    %v349 = vpop.f32.mrf.mxu0
    %v350 = vadd.f32 0.0, %v349
    %v351 = vpop.f32.mrf.mxu0
    %352 = vdwg.mxu0
    %353 = vrot.lane.b32.xlu0 %v125, 112
    %v354 = vpop.permute.xlu0 %353
    %355 = vrot.lane.b32.xlu0 %v125, 80
    %v356 = vpop.permute.xlu0 %355
    %v358 = vsel %vm103, %v354, 0
    %v361 = vsel %vm103, %v356, 0
    %363 = vmatpush.bf16.xpose.msra.mxu0 0
    %364 = vmatpush.bf16.xpose.msra.mxu0 0
    %365 = vmatpush.bf16.xpose.msra.mxu0 0
    %366 = vmatpush.bf16.xpose.msra.mxu0 0
    %367 = vmatpush.bf16.xpose.msra.mxu0 0
    %368 = vmatpush.bf16.xpose.msra.mxu0 0
    %369 = vmatpush.bf16.xpose.msra.mxu0 0
    %370 = vmatpush.bf16.xpose.msra.mxu0 %v361
    %371 = vmatmul.bf16.gmra.mxu0 %v358
    %v372 = vpop.f32.mrf.mxu0
    %v373 = vadd.f32 0.0, %v372
    %v374 = vpop.f32.mrf.mxu0
    %375 = vdwg.mxu0
    %v376 = vmul.f32 %v350, 0.25
    %v377 = vmul.f32 %v373, 0.25
    %v378 = vsel %vm103, %v376, -inf
    %379 = vmax.xlane.f32.xlu0 %v378
    %v380 = vpop.xlane.xlu0 %379
    %v381 = vsel %vm103, %v377, -inf
    %382 = vmax.xlane.f32.xlu0 %v381
    %v383 = vpop.xlane.xlu0 %382
    %v384 = vsub.f32 %v376, %v380
    %v385 = vsub.f32 %v377, %v383
    %v386 = vmul.f32 %v384, 1.442695
    %v387 = vpow.pop %v386
    %v388 = vmul.f32 %v385, 1.442695
    %v389 = vpow.pop %v388
    %v390 = vsel %vm103, %v387, 0.0
    %391 = vadd.xlane.f32.xlu0 %v390
    %v392 = vpop.xlane.xlu0 %391
    %v393 = vsel %vm103, %v389, 0.0
    %394 = vadd.xlane.f32.xlu0 %v393
    %v395 = vpop.xlane.xlu0 %394
    %v396 = vrcp.pop %v392
    %v397 = vrcp.pop %v395
    %v398 = vmul.f32 %v387, %v396
    %v399 = vmul.f32 %v389, %v397
    %v400 = vpack.c.bf16 %v398, %v398
    %v401 = vpack.c.bf16 %v399, %v399
    %402 = vrot.lane.b32.xlu0 %v100, 48
    %v403 = vpop.permute.xlu0 %402
    %v405 = vsel %vm103, %v400, 0
    %v408 = vsel %vm178, %v403, 0
    %410 = vmatpush.bf16.msra.mxu0 0
    %411 = vmatpush.bf16.msra.mxu0 0
    %412 = vmatpush.bf16.msra.mxu0 0
    %413 = vmatpush.bf16.msra.mxu0 0
    %414 = vmatpush.bf16.msra.mxu0 0
    %415 = vmatpush.bf16.msra.mxu0 0
    %416 = vmatpush.bf16.msra.mxu0 0
    %417 = vmatpush.bf16.msra.mxu0 %v408
    %418 = vmatmul.bf16.gmra.mxu0 %v405
    %v419 = vpop.f32.mrf.mxu0
    %v420 = vadd.f32 0.0, %v419
    %v421 = vpop.f32.mrf.mxu0
    %422 = vdwg.mxu0
    %423 = vrot.lane.b32.xlu0 %v125, 48
    %v424 = vpop.permute.xlu0 %423
    %v426 = vsel %vm103, %v401, 0
    %v429 = vsel %vm178, %v424, 0
    %431 = vmatpush.bf16.msra.mxu0 0
    %432 = vmatpush.bf16.msra.mxu0 0
    %433 = vmatpush.bf16.msra.mxu0 0
    %434 = vmatpush.bf16.msra.mxu0 0
    %435 = vmatpush.bf16.msra.mxu0 0
    %436 = vmatpush.bf16.msra.mxu0 0
    %437 = vmatpush.bf16.msra.mxu0 0
    %438 = vmatpush.bf16.msra.mxu0 %v429
    %439 = vmatmul.bf16.gmra.mxu0 %v426
    %v440 = vpop.f32.mrf.mxu0
    %v441 = vadd.f32 0.0, %v440
    %v442 = vpop.f32.mrf.mxu0
    %443 = vdwg.mxu0
    %444 = vrot.lane.b32.xlu0 %v100, 104
    %v445 = vpop.permute.xlu0 %444
    %446 = vrot.lane.b32.xlu0 %v100, 72
    %v447 = vpop.permute.xlu0 %446
    %v449 = vsel %vm103, %v445, 0
    %v452 = vsel %vm103, %v447, 0
    %454 = vmatpush.bf16.xpose.msra.mxu0 0
    %455 = vmatpush.bf16.xpose.msra.mxu0 0
    %456 = vmatpush.bf16.xpose.msra.mxu0 0
    %457 = vmatpush.bf16.xpose.msra.mxu0 0
    %458 = vmatpush.bf16.xpose.msra.mxu0 0
    %459 = vmatpush.bf16.xpose.msra.mxu0 0
    %460 = vmatpush.bf16.xpose.msra.mxu0 0
    %461 = vmatpush.bf16.xpose.msra.mxu0 %v452
    %462 = vmatmul.bf16.gmra.mxu0 %v449
    %v463 = vpop.f32.mrf.mxu0
    %v464 = vadd.f32 0.0, %v463
    %v465 = vpop.f32.mrf.mxu0
    %466 = vdwg.mxu0
    %467 = vrot.lane.b32.xlu0 %v125, 104
    %v468 = vpop.permute.xlu0 %467
    %469 = vrot.lane.b32.xlu0 %v125, 72
    %v470 = vpop.permute.xlu0 %469
    %v472 = vsel %vm103, %v468, 0
    %v475 = vsel %vm103, %v470, 0
    %477 = vmatpush.bf16.xpose.msra.mxu0 0
    %478 = vmatpush.bf16.xpose.msra.mxu0 0
    %479 = vmatpush.bf16.xpose.msra.mxu0 0
    %480 = vmatpush.bf16.xpose.msra.mxu0 0
    %481 = vmatpush.bf16.xpose.msra.mxu0 0
    %482 = vmatpush.bf16.xpose.msra.mxu0 0
    %483 = vmatpush.bf16.xpose.msra.mxu0 0
    %484 = vmatpush.bf16.xpose.msra.mxu0 %v475
    %485 = vmatmul.bf16.gmra.mxu0 %v472
    %v486 = vpop.f32.mrf.mxu0
    %v487 = vadd.f32 0.0, %v486
    %v488 = vpop.f32.mrf.mxu0
    %489 = vdwg.mxu0
    %v490 = vmul.f32 %v464, 0.25
    %v491 = vmul.f32 %v487, 0.25
    %v492 = vsel %vm103, %v490, -inf
    %493 = vmax.xlane.f32.xlu0 %v492
    %v494 = vpop.xlane.xlu0 %493
    %v495 = vsel %vm103, %v491, -inf
    %496 = vmax.xlane.f32.xlu0 %v495
    %v497 = vpop.xlane.xlu0 %496
    %v498 = vsub.f32 %v490, %v494
    %v499 = vsub.f32 %v491, %v497
    %v500 = vmul.f32 %v498, 1.442695
    %v501 = vpow.pop %v500
    %v502 = vmul.f32 %v499, 1.442695
    %v503 = vpow.pop %v502
    %v504 = vsel %vm103, %v501, 0.0
    %505 = vadd.xlane.f32.xlu0 %v504
    %v506 = vpop.xlane.xlu0 %505
    %v507 = vsel %vm103, %v503, 0.0
    %508 = vadd.xlane.f32.xlu0 %v507
    %v509 = vpop.xlane.xlu0 %508
    %v510 = vrcp.pop %v506
    %v511 = vrcp.pop %v509
    %v512 = vmul.f32 %v501, %v510
    %v513 = vmul.f32 %v503, %v511
    %v514 = vpack.c.bf16 %v512, %v512
    %v515 = vpack.c.bf16 %v513, %v513
    %516 = vrot.lane.b32.xlu0 %v100, 40
    %v517 = vpop.permute.xlu0 %516
    %v519 = vsel %vm103, %v514, 0
    %v522 = vsel %vm178, %v517, 0
    %524 = vmatpush.bf16.msra.mxu0 0
    %525 = vmatpush.bf16.msra.mxu0 0
    %526 = vmatpush.bf16.msra.mxu0 0
    %527 = vmatpush.bf16.msra.mxu0 0
    %528 = vmatpush.bf16.msra.mxu0 0
    %529 = vmatpush.bf16.msra.mxu0 0
    %530 = vmatpush.bf16.msra.mxu0 0
    %531 = vmatpush.bf16.msra.mxu0 %v522
    %532 = vmatmul.bf16.gmra.mxu0 %v519
    %v533 = vpop.f32.mrf.mxu0
    %v534 = vadd.f32 0.0, %v533
    %v535 = vpop.f32.mrf.mxu0
    %536 = vdwg.mxu0
    %537 = vrot.lane.b32.xlu0 %v125, 40
    %v538 = vpop.permute.xlu0 %537
    %v540 = vsel %vm103, %v515, 0
    %v543 = vsel %vm178, %v538, 0
    %545 = vmatpush.bf16.msra.mxu0 0
    %546 = vmatpush.bf16.msra.mxu0 0
    %547 = vmatpush.bf16.msra.mxu0 0
    %548 = vmatpush.bf16.msra.mxu0 0
    %549 = vmatpush.bf16.msra.mxu0 0
    %550 = vmatpush.bf16.msra.mxu0 0
    %551 = vmatpush.bf16.msra.mxu0 0
    %552 = vmatpush.bf16.msra.mxu0 %v543
    %553 = vmatmul.bf16.gmra.mxu0 %v540
    %v554 = vpop.f32.mrf.mxu0
    %v555 = vadd.f32 0.0, %v554
    %v556 = vpop.f32.mrf.mxu0
    %557 = vdwg.mxu0
    %560 = vrot.lane.b32.xlu0 %v306, 8
    %v561 = vpop.permute.xlu0 %560
    %562 = vrot.lane.b32.xlu0 %v327, 8
    %v563 = vpop.permute.xlu0 %562
    %568 = vrot.lane.b32.xlu0 %v420, 16
    %v569 = vpop.permute.xlu0 %568
    %570 = vrot.lane.b32.xlu0 %v441, 16
    %v571 = vpop.permute.xlu0 %570
    %576 = vrot.lane.b32.xlu0 %v534, 24
    %v577 = vpop.permute.xlu0 %576
    %578 = vrot.lane.b32.xlu0 %v555, 24
    %v579 = vpop.permute.xlu0 %578
    %v582 = vsel %vm103, %v192, %v561
    %v583 = vsel %vm103, %v213, %v563
    %vm584 = vcmask 130048
    %v585 = vsel %vm584, %v582, %v569
    %v586 = vsel %vm584, %v583, %v571
    %vm587 = vcmask 195584
    %v588 = vsel %vm587, %v585, %v577
    %v589 = vsel %vm587, %v586, %v579
    %v590 = vld [vmem:[%s2] sm:$0xf]
    %v591 = vld [vmem:[%s2 + $0x4] sm:$0xf]
    %v592 = vld [vmem:[%s2 + $0x8] sm:$0xf]
    %v593 = vld [vmem:[%s2 + $0xc] sm:$0xf]
    %v594 = vpack.c.bf16 %v589, %v588
    %v595 = vperm.slane %v59, 1
    %v600 = vunpack.c.l.b16 %v590
    %v601 = vunpack.c.l.b16 %v591
    %v602 = vunpack.c.l.b16 %v592
    %v603 = vunpack.c.l.b16 %v593
    %v604 = vpack.c.b16 %v601, %v600
    %v605 = vpack.c.b16 %v603, %v602
    %v609 = vsel %vm78, %v594, 0
    %611 = vmatpush.bf16.msra.mxu0 0
    %612 = vmatpush.bf16.msra.mxu0 0
    %613 = vmatpush.bf16.msra.mxu0 0
    %614 = vmatpush.bf16.msra.mxu0 0
    %615 = vmatpush.bf16.msra.mxu0 0
    %616 = vmatpush.bf16.msra.mxu0 0
    %617 = vmatpush.bf16.msra.mxu0 %v605
    %618 = vmatpush.bf16.msra.mxu0 %v604
    %619 = vmatmul.bf16.gmra.mxu0 %v609
    %v620 = vpop.f32.mrf.mxu0
    %v621 = vadd.f32 %v595, %v620
    %v622 = vpop.f32.mrf.mxu0
    %v623 = vadd.f32 %v595, %v622
    %624 = vdwg.mxu0
    %v625 = vadd.f32 %v621, %v57
    %v626 = vadd.f32 %v623, %v58
    %v627 = vsel %vm78, %v625, 0.0
    %628 = vadd.xlane.f32.xlu0 %v627
    %v629 = vpop.xlane.xlu0 %628
    %v630 = vsel %vm78, %v626, 0.0
    %631 = vadd.xlane.f32.xlu0 %v630
    %v632 = vpop.xlane.xlu0 %631
    %v633 = vrcp.pop 32.0
    %v634 = vmul.f32 32.0, %v633
    %v635 = vsub.f32 1.0, %v634
    %v636 = vmul.f32 %v633, %v635
    %v637 = vadd.f32 %v633, %v636
    %vm638 = vweird.f32 %v633
    %v639 = vsel %vm638, %v633, %v637
    %v640 = vmul.f32 %v629, %v639
    %v641 = vmul.f32 %v632, %v639
    %v642 = vsub.f32 %v625, %v640
    %v643 = vsub.f32 %v626, %v641
    %v644 = vmul.f32 %v642, %v642
    %v645 = vmul.f32 %v643, %v643
    %v646 = vsel %vm78, %v644, 0.0
    %647 = vadd.xlane.f32.xlu0 %v646
    %v648 = vpop.xlane.xlu0 %647
    %v649 = vsel %vm78, %v645, 0.0
    %650 = vadd.xlane.f32.xlu0 %v649
    %v651 = vpop.xlane.xlu0 %650
    %v652 = vmul.f32 %v648, %v639
    %v653 = vmul.f32 %v651, %v639
    %v654 = vadd.f32 %v652, 1e-05
    %v655 = vadd.f32 %v653, 1e-05
    %v656 = vrsqrt.pop %v654
    %v657 = vmul.f32 %v656, %v654
    %v658 = vmul.f32 %v657, %v656
    %v659 = vmul.f32 0.5, %v658
    %v660 = vsub.f32 1.5, %v659
    %v661 = vmul.f32 %v656, %v660
    %vm662 = vweird.f32 %v654
    %vm663 = vweird.f32 %v656
    %vm664 = vmor %vm662, %vm663
    %v665 = vsel %vm664, %v656, %v661
    %v666 = vrsqrt.pop %v655
    %v667 = vmul.f32 %v666, %v655
    %v668 = vmul.f32 %v667, %v666
    %v669 = vmul.f32 0.5, %v668
    %v670 = vsub.f32 1.5, %v669
    %v671 = vmul.f32 %v666, %v670
    %vm672 = vweird.f32 %v655
    %vm673 = vweird.f32 %v666
    %vm674 = vmor %vm672, %vm673
    %v675 = vsel %vm674, %v666, %v671
    %v676 = vmul.f32 %v642, %v665
    %v677 = vmul.f32 %v643, %v675
    %v678 = vperm.slane %v59, 2
    %v679 = vmul.f32 %v676, %v678
    %v680 = vmul.f32 %v677, %v678
    %v681 = vperm.slane %v59, 3
    %v682 = vadd.f32 %v679, %v681
    %v683 = vadd.f32 %v680, %v681
    %v684 = vld [vmem:[%s3] sm:$0xf]
    %v685 = vld [vmem:[%s3 + $0x4] sm:$0xf]
    %v686 = vld [vmem:[%s3 + $0x8] sm:$0xf]
    %v687 = vld [vmem:[%s3 + $0xc] sm:$0xf]
    %v688 = vpack.c.bf16 %v683, %v682
    %v689 = vperm.slane %v59, 4
    %v694 = vunpack.c.l.b16 %v684
    %v695 = vunpack.c.l.b16 %v685
    %v696 = vunpack.c.l.b16 %v686
    %v697 = vunpack.c.l.b16 %v687
    %v698 = vpack.c.b16 %v695, %v694
    %v699 = vpack.c.b16 %v697, %v696
    %v703 = vsel %vm78, %v688, 0
    %705 = vmatpush.bf16.msra.mxu0 0
    %706 = vmatpush.bf16.msra.mxu0 0
    %707 = vmatpush.bf16.msra.mxu0 0
    %708 = vmatpush.bf16.msra.mxu0 0
    %709 = vmatpush.bf16.msra.mxu0 0
    %710 = vmatpush.bf16.msra.mxu0 0
    %711 = vmatpush.bf16.msra.mxu0 %v699
    %712 = vmatpush.bf16.msra.mxu0 %v698
    %713 = vmatmul.bf16.gmra.mxu0 %v703
    %v714 = vpop.f32.mrf.mxu0
    %v715 = vadd.f32 %v689, %v714
    %v716 = vpop.f32.mrf.mxu0
    %v717 = vadd.f32 %v689, %v716
    %718 = vdwg.mxu0
    %v719 = vmul.f32 %v715, 0.5
    %v720 = vmul.f32 %v717, 0.5
    %v721 = vmul.f32 %v715, 0.044715
    %v722 = vmul.f32 %v717, 0.044715
    %v723 = vmul.f32 %v721, %v715
    %v724 = vmul.f32 %v722, %v717
    %v725 = vmul.f32 %v723, %v715
    %v726 = vmul.f32 %v724, %v717
    %v727 = vadd.f32 %v715, %v725
    %v728 = vadd.f32 %v717, %v726
    %v729 = vmul.f32 %v727, 0.7978846
    %v730 = vmul.f32 %v728, 0.7978846
    %v731 = vtanh.pop %v729
    %v732 = vtanh.pop %v730
    %v733 = vadd.f32 %v731, 1.0
    %v734 = vadd.f32 %v732, 1.0
    %v735 = vmul.f32 %v719, %v733
    %v736 = vmul.f32 %v720, %v734
    %v737 = vld [vmem:[%s4] sm:$0xf]
    %v738 = vld [vmem:[%s4 + $0x4] sm:$0xf]
    %v739 = vld [vmem:[%s4 + $0x8] sm:$0xf]
    %v740 = vld [vmem:[%s4 + $0xc] sm:$0xf]
    %v741 = vld [vmem:[%s4 + $0x10] sm:$0xf]
    %v742 = vld [vmem:[%s4 + $0x14] sm:$0xf]
    %v743 = vld [vmem:[%s4 + $0x18] sm:$0xf]
    %v744 = vld [vmem:[%s4 + $0x1c] sm:$0xf]
    %v745 = vpack.c.bf16 %v736, %v735
    %v746 = vperm.slane %v59, 5
    %v755 = vunpack.c.l.b16 %v737
    %v756 = vunpack.c.l.b16 %v738
    %v757 = vunpack.c.l.b16 %v739
    %v758 = vunpack.c.l.b16 %v740
    %v759 = vunpack.c.l.b16 %v741
    %v760 = vunpack.c.l.b16 %v742
    %v761 = vunpack.c.l.b16 %v743
    %v762 = vunpack.c.l.b16 %v744
    %v763 = vpack.c.b16 %v756, %v755
    %v764 = vpack.c.b16 %v758, %v757
    %v765 = vpack.c.b16 %v760, %v759
    %v766 = vpack.c.b16 %v762, %v761
    %vm771 = vcmask 523264
    %v773 = vsel %vm771, %v745, 0
    %775 = vmatpush.bf16.msra.mxu0 0
    %776 = vmatpush.bf16.msra.mxu0 0
    %777 = vmatpush.bf16.msra.mxu0 0
    %778 = vmatpush.bf16.msra.mxu0 0
    %779 = vmatpush.bf16.msra.mxu0 %v766
    %780 = vmatpush.bf16.msra.mxu0 %v765
    %781 = vmatpush.bf16.msra.mxu0 %v764
    %782 = vmatpush.bf16.msra.mxu0 %v763
    %783 = vmatmul.bf16.gmra.mxu0 %v773
    %v784 = vpop.f32.mrf.mxu0
    %v785 = vadd.f32 %v746, %v784
    %v786 = vpop.f32.mrf.mxu0
    %v787 = vadd.f32 %v746, %v786
    %788 = vdwg.mxu0
    %v789 = vadd.f32 %v682, %v785
    %v790 = vadd.f32 %v683, %v787
    %v791 = vsel %vm78, %v789, 0.0
    %792 = vadd.xlane.f32.xlu0 %v791
    %v793 = vpop.xlane.xlu0 %792
    %v794 = vsel %vm78, %v790, 0.0
    %795 = vadd.xlane.f32.xlu0 %v794
    %v796 = vpop.xlane.xlu0 %795
    %v797 = vmul.f32 %v793, %v639
    %v798 = vmul.f32 %v796, %v639
    %v799 = vsub.f32 %v789, %v797
    %v800 = vsub.f32 %v790, %v798
    %v801 = vmul.f32 %v799, %v799
    %v802 = vmul.f32 %v800, %v800
    %v803 = vsel %vm78, %v801, 0.0
    %804 = vadd.xlane.f32.xlu0 %v803
    %v805 = vpop.xlane.xlu0 %804
    %v806 = vsel %vm78, %v802, 0.0
    %807 = vadd.xlane.f32.xlu0 %v806
    %v808 = vpop.xlane.xlu0 %807
    %v809 = vmul.f32 %v805, %v639
    %v810 = vmul.f32 %v808, %v639
    %v811 = vadd.f32 %v809, 1e-05
    %v812 = vadd.f32 %v810, 1e-05
    %v813 = vrsqrt.pop %v811
    %v814 = vmul.f32 %v813, %v811
    %v815 = vmul.f32 %v814, %v813
    %v816 = vmul.f32 0.5, %v815
    %v817 = vsub.f32 1.5, %v816
    %v818 = vmul.f32 %v813, %v817
    %vm819 = vweird.f32 %v811
    %vm820 = vweird.f32 %v813
    %vm821 = vmor %vm819, %vm820
    %v822 = vsel %vm821, %v813, %v818
    %v823 = vrsqrt.pop %v812
    %v824 = vmul.f32 %v823, %v812
    %v825 = vmul.f32 %v824, %v823
    %v826 = vmul.f32 0.5, %v825
    %v827 = vsub.f32 1.5, %v826
    %v828 = vmul.f32 %v823, %v827
    %vm829 = vweird.f32 %v812
    %vm830 = vweird.f32 %v823
    %vm831 = vmor %vm829, %vm830
    %v832 = vsel %vm831, %v823, %v828
    %v833 = vmul.f32 %v799, %v822
    %v834 = vmul.f32 %v800, %v832
    %v835 = vperm.slane %v59, 6
    %v836 = vmul.f32 %v833, %v835
    %v837 = vmul.f32 %v834, %v835
    %v838 = vperm.slane %v59, 7
    %v839 = vadd.f32 %v836, %v838
    %v840 = vadd.f32 %v837, %v838
    %s841 = scalar_lea.vmem [#allocation5], 8
    %v842 = vld [vmem:[%s841] sm:$0xff]
    %s843 = scalar_lea.vmem %s1, 16
    %v844 = vld [vmem:[%s843] sm:$0xf]
    %v845 = vld [vmem:[%s843 + $0x4] sm:$0xf]
    %v846 = vld [vmem:[%s843 + $0x8] sm:$0xf]
    %v847 = vld [vmem:[%s843 + $0xc] sm:$0xf]
    %v848 = vpack.c.bf16 %v840, %v839
    %v849 = vperm.slane %v842, 0
    %v854 = vunpack.c.l.b16 %v844
    %v855 = vunpack.c.l.b16 %v845
    %v856 = vunpack.c.l.b16 %v846
    %v857 = vunpack.c.l.b16 %v847
    %v858 = vpack.c.b16 %v855, %v854
    %v859 = vpack.c.b16 %v857, %v856
    %v863 = vsel %vm78, %v848, 0
    %865 = vmatpush.bf16.msra.mxu0 0
    %866 = vmatpush.bf16.msra.mxu0 0
    %867 = vmatpush.bf16.msra.mxu0 0
    %868 = vmatpush.bf16.msra.mxu0 0
    %869 = vmatpush.bf16.msra.mxu0 0
    %870 = vmatpush.bf16.msra.mxu0 0
    %871 = vmatpush.bf16.msra.mxu0 %v859
    %872 = vmatpush.bf16.msra.mxu0 %v858
    %873 = vmatmul.bf16.gmra.mxu0 %v863
    %v874 = vpop.f32.mrf.mxu0
    %v875 = vadd.f32 %v849, %v874
    %v876 = vpop.f32.mrf.mxu0
    %v877 = vadd.f32 %v849, %v876
    %878 = vdwg.mxu0
    %v879 = vpack.c.bf16 %v875, %v875
    %v880 = vpack.c.bf16 %v877, %v877
    %v882 = vunpack.c.l.b16 %v879
    %v883 = vpack.c.b16 %v882, %v882
    %884 = vrot.lane.b32.xlu0 %v883, 96
    %v885 = vpop.permute.xlu0 %884
    %v887 = vsel %vm103, %v879, 0
    %v890 = vsel %vm103, %v885, 0
    %892 = vmatpush.bf16.xpose.msra.mxu0 0
    %893 = vmatpush.bf16.xpose.msra.mxu0 0
    %894 = vmatpush.bf16.xpose.msra.mxu0 0
    %895 = vmatpush.bf16.xpose.msra.mxu0 0
    %896 = vmatpush.bf16.xpose.msra.mxu0 0
    %897 = vmatpush.bf16.xpose.msra.mxu0 0
    %898 = vmatpush.bf16.xpose.msra.mxu0 0
    %899 = vmatpush.bf16.xpose.msra.mxu0 %v890
    %900 = vmatmul.bf16.gmra.mxu0 %v887
    %v901 = vpop.f32.mrf.mxu0
    %v902 = vadd.f32 0.0, %v901
    %v903 = vpop.f32.mrf.mxu0
    %904 = vdwg.mxu0
    %v906 = vunpack.c.l.b16 %v880
    %v907 = vpack.c.b16 %v906, %v906
    %908 = vrot.lane.b32.xlu0 %v907, 96
    %v909 = vpop.permute.xlu0 %908
    %v911 = vsel %vm103, %v880, 0
    %v914 = vsel %vm103, %v909, 0
    %916 = vmatpush.bf16.xpose.msra.mxu0 0
    %917 = vmatpush.bf16.xpose.msra.mxu0 0
    %918 = vmatpush.bf16.xpose.msra.mxu0 0
    %919 = vmatpush.bf16.xpose.msra.mxu0 0
    %920 = vmatpush.bf16.xpose.msra.mxu0 0
    %921 = vmatpush.bf16.xpose.msra.mxu0 0
    %922 = vmatpush.bf16.xpose.msra.mxu0 0
    %923 = vmatpush.bf16.xpose.msra.mxu0 %v914
    %924 = vmatmul.bf16.gmra.mxu0 %v911
    %v925 = vpop.f32.mrf.mxu0
    %v926 = vadd.f32 0.0, %v925
    %v927 = vpop.f32.mrf.mxu0
    %928 = vdwg.mxu0
    %v929 = vmul.f32 %v902, 0.25
    %v930 = vmul.f32 %v926, 0.25
    %v931 = vsel %vm103, %v929, -inf
    %932 = vmax.xlane.f32.xlu0 %v931
    %v933 = vpop.xlane.xlu0 %932
    %v934 = vsel %vm103, %v930, -inf
    %935 = vmax.xlane.f32.xlu0 %v934
    %v936 = vpop.xlane.xlu0 %935
    %v937 = vsub.f32 %v929, %v933
    %v938 = vsub.f32 %v930, %v936
    %v939 = vmul.f32 %v937, 1.442695
    %v940 = vpow.pop %v939
    %v941 = vmul.f32 %v938, 1.442695
    %v942 = vpow.pop %v941
    %v943 = vsel %vm103, %v940, 0.0
    %944 = vadd.xlane.f32.xlu0 %v943
    %v945 = vpop.xlane.xlu0 %944
    %v946 = vsel %vm103, %v942, 0.0
    %947 = vadd.xlane.f32.xlu0 %v946
    %v948 = vpop.xlane.xlu0 %947
    %v949 = vrcp.pop %v945
    %v950 = vrcp.pop %v948
    %v951 = vmul.f32 %v940, %v949
    %v952 = vmul.f32 %v942, %v950
    %v953 = vpack.c.bf16 %v951, %v951
    %v954 = vpack.c.bf16 %v952, %v952
    %955 = vrot.lane.b32.xlu0 %v883, 64
    %v956 = vpop.permute.xlu0 %955
    %v958 = vsel %vm103, %v953, 0
    %v961 = vsel %vm178, %v956, 0
    %963 = vmatpush.bf16.msra.mxu0 0
    %964 = vmatpush.bf16.msra.mxu0 0
    %965 = vmatpush.bf16.msra.mxu0 0
    %966 = vmatpush.bf16.msra.mxu0 0
    %967 = vmatpush.bf16.msra.mxu0 0
    %968 = vmatpush.bf16.msra.mxu0 0
    %969 = vmatpush.bf16.msra.mxu0 0
    %970 = vmatpush.bf16.msra.mxu0 %v961
    %971 = vmatmul.bf16.gmra.mxu0 %v958
    %v972 = vpop.f32.mrf.mxu0
    %v973 = vadd.f32 0.0, %v972
    %v974 = vpop.f32.mrf.mxu0
    %975 = vdwg.mxu0
    %976 = vrot.lane.b32.xlu0 %v907, 64
    %v977 = vpop.permute.xlu0 %976
    %v979 = vsel %vm103, %v954, 0
    %v982 = vsel %vm178, %v977, 0
    %984 = vmatpush.bf16.msra.mxu0 0
    %985 = vmatpush.bf16.msra.mxu0 0
    %986 = vmatpush.bf16.msra.mxu0 0
    %987 = vmatpush.bf16.msra.mxu0 0
    %988 = vmatpush.bf16.msra.mxu0 0
    %989 = vmatpush.bf16.msra.mxu0 0
    %990 = vmatpush.bf16.msra.mxu0 0
    %991 = vmatpush.bf16.msra.mxu0 %v982
    %992 = vmatmul.bf16.gmra.mxu0 %v979
    %v993 = vpop.f32.mrf.mxu0
    %v994 = vadd.f32 0.0, %v993
    %v995 = vpop.f32.mrf.mxu0
    %996 = vdwg.mxu0
    %997 = vrot.lane.b32.xlu0 %v883, 120
    %v998 = vpop.permute.xlu0 %997
    %999 = vrot.lane.b32.xlu0 %v883, 88
    %v1000 = vpop.permute.xlu0 %999
    %v1002 = vsel %vm103, %v998, 0
    %v1005 = vsel %vm103, %v1000, 0
    %1007 = vmatpush.bf16.xpose.msra.mxu0 0
    %1008 = vmatpush.bf16.xpose.msra.mxu0 0
    %1009 = vmatpush.bf16.xpose.msra.mxu0 0
    %1010 = vmatpush.bf16.xpose.msra.mxu0 0
    %1011 = vmatpush.bf16.xpose.msra.mxu0 0
    %1012 = vmatpush.bf16.xpose.msra.mxu0 0
    %1013 = vmatpush.bf16.xpose.msra.mxu0 0
    %1014 = vmatpush.bf16.xpose.msra.mxu0 %v1005
    %1015 = vmatmul.bf16.gmra.mxu0 %v1002
    %v1016 = vpop.f32.mrf.mxu0
    %v1017 = vadd.f32 0.0, %v1016
    %v1018 = vpop.f32.mrf.mxu0
    %1019 = vdwg.mxu0
    %1020 = vrot.lane.b32.xlu0 %v907, 120
    %v1021 = vpop.permute.xlu0 %1020
    %1022 = vrot.lane.b32.xlu0 %v907, 88
    %v1023 = vpop.permute.xlu0 %1022
    %v1025 = vsel %vm103, %v1021, 0
    %v1028 = vsel %vm103, %v1023, 0
    %1030 = vmatpush.bf16.xpose.msra.mxu0 0
    %1031 = vmatpush.bf16.xpose.msra.mxu0 0
    %1032 = vmatpush.bf16.xpose.msra.mxu0 0
    %1033 = vmatpush.bf16.xpose.msra.mxu0 0
    %1034 = vmatpush.bf16.xpose.msra.mxu0 0
    %1035 = vmatpush.bf16.xpose.msra.mxu0 0
    %1036 = vmatpush.bf16.xpose.msra.mxu0 0
    %1037 = vmatpush.bf16.xpose.msra.mxu0 %v1028
    %1038 = vmatmul.bf16.gmra.mxu0 %v1025
    %v1039 = vpop.f32.mrf.mxu0
    %v1040 = vadd.f32 0.0, %v1039
    %v1041 = vpop.f32.mrf.mxu0
    %1042 = vdwg.mxu0
    %v1043 = vmul.f32 %v1017, 0.25
    %v1044 = vmul.f32 %v1040, 0.25
    %v1045 = vsel %vm103, %v1043, -inf
    %1046 = vmax.xlane.f32.xlu0 %v1045
    %v1047 = vpop.xlane.xlu0 %1046
    %v1048 = vsel %vm103, %v1044, -inf
    %1049 = vmax.xlane.f32.xlu0 %v1048
    %v1050 = vpop.xlane.xlu0 %1049
    %v1051 = vsub.f32 %v1043, %v1047
    %v1052 = vsub.f32 %v1044, %v1050
    %v1053 = vmul.f32 %v1051, 1.442695
    %v1054 = vpow.pop %v1053
    %v1055 = vmul.f32 %v1052, 1.442695
    %v1056 = vpow.pop %v1055
    %v1057 = vsel %vm103, %v1054, 0.0
    %1058 = vadd.xlane.f32.xlu0 %v1057
    %v1059 = vpop.xlane.xlu0 %1058
    %v1060 = vsel %vm103, %v1056, 0.0
    %1061 = vadd.xlane.f32.xlu0 %v1060
    %v1062 = vpop.xlane.xlu0 %1061
    %v1063 = vrcp.pop %v1059
    %v1064 = vrcp.pop %v1062
    %v1065 = vmul.f32 %v1054, %v1063
    %v1066 = vmul.f32 %v1056, %v1064
    %v1067 = vpack.c.bf16 %v1065, %v1065
    %v1068 = vpack.c.bf16 %v1066, %v1066
    %1069 = vrot.lane.b32.xlu0 %v883, 56
    %v1070 = vpop.permute.xlu0 %1069
    %v1072 = vsel %vm103, %v1067, 0
    %v1075 = vsel %vm178, %v1070, 0
    %1077 = vmatpush.bf16.msra.mxu0 0
    %1078 = vmatpush.bf16.msra.mxu0 0
    %1079 = vmatpush.bf16.msra.mxu0 0
    %1080 = vmatpush.bf16.msra.mxu0 0
    %1081 = vmatpush.bf16.msra.mxu0 0
    %1082 = vmatpush.bf16.msra.mxu0 0
    %1083 = vmatpush.bf16.msra.mxu0 0
    %1084 = vmatpush.bf16.msra.mxu0 %v1075
    %1085 = vmatmul.bf16.gmra.mxu0 %v1072
    %v1086 = vpop.f32.mrf.mxu0
    %v1087 = vadd.f32 0.0, %v1086
    %v1088 = vpop.f32.mrf.mxu0
    %1089 = vdwg.mxu0
    %1090 = vrot.lane.b32.xlu0 %v907, 56
    %v1091 = vpop.permute.xlu0 %1090
    %v1093 = vsel %vm103, %v1068, 0
    %v1096 = vsel %vm178, %v1091, 0
    %1098 = vmatpush.bf16.msra.mxu0 0
    %1099 = vmatpush.bf16.msra.mxu0 0
    %1100 = vmatpush.bf16.msra.mxu0 0
    %1101 = vmatpush.bf16.msra.mxu0 0
    %1102 = vmatpush.bf16.msra.mxu0 0
    %1103 = vmatpush.bf16.msra.mxu0 0
    %1104 = vmatpush.bf16.msra.mxu0 0
    %1105 = vmatpush.bf16.msra.mxu0 %v1096
    %1106 = vmatmul.bf16.gmra.mxu0 %v1093
    %v1107 = vpop.f32.mrf.mxu0
    %v1108 = vadd.f32 0.0, %v1107
    %v1109 = vpop.f32.mrf.mxu0
    %1110 = vdwg.mxu0
    %1111 = vrot.lane.b32.xlu0 %v883, 112
    %v1112 = vpop.permute.xlu0 %1111
    %1113 = vrot.lane.b32.xlu0 %v883, 80
    %v1114 = vpop.permute.xlu0 %1113
    %v1116 = vsel %vm103, %v1112, 0
    %v1119 = vsel %vm103, %v1114, 0
    %1121 = vmatpush.bf16.xpose.msra.mxu0 0
    %1122 = vmatpush.bf16.xpose.msra.mxu0 0
    %1123 = vmatpush.bf16.xpose.msra.mxu0 0
    %1124 = vmatpush.bf16.xpose.msra.mxu0 0
    %1125 = vmatpush.bf16.xpose.msra.mxu0 0
    %1126 = vmatpush.bf16.xpose.msra.mxu0 0
    %1127 = vmatpush.bf16.xpose.msra.mxu0 0
    %1128 = vmatpush.bf16.xpose.msra.mxu0 %v1119
    %1129 = vmatmul.bf16.gmra.mxu0 %v1116
    %v1130 = vpop.f32.mrf.mxu0
    %v1131 = vadd.f32 0.0, %v1130
    %v1132 = vpop.f32.mrf.mxu0
    %1133 = vdwg.mxu0
    %1134 = vrot.lane.b32.xlu0 %v907, 112
    %v1135 = vpop.permute.xlu0 %1134
    %1136 = vrot.lane.b32.xlu0 %v907, 80
    %v1137 = vpop.permute.xlu0 %1136
    %v1139 = vsel %vm103, %v1135, 0
    %v1142 = vsel %vm103, %v1137, 0
    %1144 = vmatpush.bf16.xpose.msra.mxu0 0
    %1145 = vmatpush.bf16.xpose.msra.mxu0 0
    %1146 = vmatpush.bf16.xpose.msra.mxu0 0
    %1147 = vmatpush.bf16.xpose.msra.mxu0 0
    %1148 = vmatpush.bf16.xpose.msra.mxu0 0
    %1149 = vmatpush.bf16.xpose.msra.mxu0 0
    %1150 = vmatpush.bf16.xpose.msra.mxu0 0
    %1151 = vmatpush.bf16.xpose.msra.mxu0 %v1142
    %1152 = vmatmul.bf16.gmra.mxu0 %v1139
    %v1153 = vpop.f32.mrf.mxu0
    %v1154 = vadd.f32 0.0, %v1153
    %v1155 = vpop.f32.mrf.mxu0
    %1156 = vdwg.mxu0
    %v1157 = vmul.f32 %v1131, 0.25
    %v1158 = vmul.f32 %v1154, 0.25
    %v1159 = vsel %vm103, %v1157, -inf
    %1160 = vmax.xlane.f32.xlu0 %v1159
    %v1161 = vpop.xlane.xlu0 %1160
    %v1162 = vsel %vm103, %v1158, -inf
    %1163 = vmax.xlane.f32.xlu0 %v1162
    %v1164 = vpop.xlane.xlu0 %1163
    %v1165 = vsub.f32 %v1157, %v1161
    %v1166 = vsub.f32 %v1158, %v1164
    %v1167 = vmul.f32 %v1165, 1.442695
    %v1168 = vpow.pop %v1167
    %v1169 = vmul.f32 %v1166, 1.442695
    %v1170 = vpow.pop %v1169
    %v1171 = vsel %vm103, %v1168, 0.0
    %1172 = vadd.xlane.f32.xlu0 %v1171
    %v1173 = vpop.xlane.xlu0 %1172
    %v1174 = vsel %vm103, %v1170, 0.0
    %1175 = vadd.xlane.f32.xlu0 %v1174
    %v1176 = vpop.xlane.xlu0 %1175
    %v1177 = vrcp.pop %v1173
    %v1178 = vrcp.pop %v1176
    %v1179 = vmul.f32 %v1168, %v1177
    %v1180 = vmul.f32 %v1170, %v1178
    %v1181 = vpack.c.bf16 %v1179, %v1179
    %v1182 = vpack.c.bf16 %v1180, %v1180
    %1183 = vrot.lane.b32.xlu0 %v883, 48
    %v1184 = vpop.permute.xlu0 %1183
    %v1186 = vsel %vm103, %v1181, 0
    %v1189 = vsel %vm178, %v1184, 0
    %1191 = vmatpush.bf16.msra.mxu0 0
    %1192 = vmatpush.bf16.msra.mxu0 0
    %1193 = vmatpush.bf16.msra.mxu0 0
    %1194 = vmatpush.bf16.msra.mxu0 0
    %1195 = vmatpush.bf16.msra.mxu0 0
    %1196 = vmatpush.bf16.msra.mxu0 0
    %1197 = vmatpush.bf16.msra.mxu0 0
    %1198 = vmatpush.bf16.msra.mxu0 %v1189
    %1199 = vmatmul.bf16.gmra.mxu0 %v1186
    %v1200 = vpop.f32.mrf.mxu0
    %v1201 = vadd.f32 0.0, %v1200
    %v1202 = vpop.f32.mrf.mxu0
    %1203 = vdwg.mxu0
    %1204 = vrot.lane.b32.xlu0 %v907, 48
    %v1205 = vpop.permute.xlu0 %1204
    %v1207 = vsel %vm103, %v1182, 0
    %v1210 = vsel %vm178, %v1205, 0
    %1212 = vmatpush.bf16.msra.mxu0 0
    %1213 = vmatpush.bf16.msra.mxu0 0
    %1214 = vmatpush.bf16.msra.mxu0 0
    %1215 = vmatpush.bf16.msra.mxu0 0
    %1216 = vmatpush.bf16.msra.mxu0 0
    %1217 = vmatpush.bf16.msra.mxu0 0
    %1218 = vmatpush.bf16.msra.mxu0 0
    %1219 = vmatpush.bf16.msra.mxu0 %v1210
    %1220 = vmatmul.bf16.gmra.mxu0 %v1207
    %v1221 = vpop.f32.mrf.mxu0
    %v1222 = vadd.f32 0.0, %v1221
    %v1223 = vpop.f32.mrf.mxu0
    %1224 = vdwg.mxu0
    %1225 = vrot.lane.b32.xlu0 %v883, 104
    %v1226 = vpop.permute.xlu0 %1225
    %1227 = vrot.lane.b32.xlu0 %v883, 72
    %v1228 = vpop.permute.xlu0 %1227
    %v1230 = vsel %vm103, %v1226, 0
    %v1233 = vsel %vm103, %v1228, 0
    %1235 = vmatpush.bf16.xpose.msra.mxu0 0
    %1236 = vmatpush.bf16.xpose.msra.mxu0 0
    %1237 = vmatpush.bf16.xpose.msra.mxu0 0
    %1238 = vmatpush.bf16.xpose.msra.mxu0 0
    %1239 = vmatpush.bf16.xpose.msra.mxu0 0
    %1240 = vmatpush.bf16.xpose.msra.mxu0 0
    %1241 = vmatpush.bf16.xpose.msra.mxu0 0
    %1242 = vmatpush.bf16.xpose.msra.mxu0 %v1233
    %1243 = vmatmul.bf16.gmra.mxu0 %v1230
    %v1244 = vpop.f32.mrf.mxu0
    %v1245 = vadd.f32 0.0, %v1244
    %v1246 = vpop.f32.mrf.mxu0
    %1247 = vdwg.mxu0
    %1248 = vrot.lane.b32.xlu0 %v907, 104
    %v1249 = vpop.permute.xlu0 %1248
    %1250 = vrot.lane.b32.xlu0 %v907, 72
    %v1251 = vpop.permute.xlu0 %1250
    %v1253 = vsel %vm103, %v1249, 0
    %v1256 = vsel %vm103, %v1251, 0
    %1258 = vmatpush.bf16.xpose.msra.mxu0 0
    %1259 = vmatpush.bf16.xpose.msra.mxu0 0
    %1260 = vmatpush.bf16.xpose.msra.mxu0 0
    %1261 = vmatpush.bf16.xpose.msra.mxu0 0
    %1262 = vmatpush.bf16.xpose.msra.mxu0 0
    %1263 = vmatpush.bf16.xpose.msra.mxu0 0
    %1264 = vmatpush.bf16.xpose.msra.mxu0 0
    %1265 = vmatpush.bf16.xpose.msra.mxu0 %v1256
    %1266 = vmatmul.bf16.gmra.mxu0 %v1253
    %v1267 = vpop.f32.mrf.mxu0
    %v1268 = vadd.f32 0.0, %v1267
    %v1269 = vpop.f32.mrf.mxu0
    %1270 = vdwg.mxu0
    %v1271 = vmul.f32 %v1245, 0.25
    %v1272 = vmul.f32 %v1268, 0.25
    %v1273 = vsel %vm103, %v1271, -inf
    %1274 = vmax.xlane.f32.xlu0 %v1273
    %v1275 = vpop.xlane.xlu0 %1274
    %v1276 = vsel %vm103, %v1272, -inf
    %1277 = vmax.xlane.f32.xlu0 %v1276
    %v1278 = vpop.xlane.xlu0 %1277
    %v1279 = vsub.f32 %v1271, %v1275
    %v1280 = vsub.f32 %v1272, %v1278
    %v1281 = vmul.f32 %v1279, 1.442695
    %v1282 = vpow.pop %v1281
    %v1283 = vmul.f32 %v1280, 1.442695
    %v1284 = vpow.pop %v1283
    %v1285 = vsel %vm103, %v1282, 0.0
    %1286 = vadd.xlane.f32.xlu0 %v1285
    %v1287 = vpop.xlane.xlu0 %1286
    %v1288 = vsel %vm103, %v1284, 0.0
    %1289 = vadd.xlane.f32.xlu0 %v1288
    %v1290 = vpop.xlane.xlu0 %1289
    %v1291 = vrcp.pop %v1287
    %v1292 = vrcp.pop %v1290
    %v1293 = vmul.f32 %v1282, %v1291
    %v1294 = vmul.f32 %v1284, %v1292
    %v1295 = vpack.c.bf16 %v1293, %v1293
    %v1296 = vpack.c.bf16 %v1294, %v1294
    %1297 = vrot.lane.b32.xlu0 %v883, 40
    %v1298 = vpop.permute.xlu0 %1297
    %v1300 = vsel %vm103, %v1295, 0
    %v1303 = vsel %vm178, %v1298, 0
    %1305 = vmatpush.bf16.msra.mxu0 0
    %1306 = vmatpush.bf16.msra.mxu0 0
    %1307 = vmatpush.bf16.msra.mxu0 0
    %1308 = vmatpush.bf16.msra.mxu0 0
    %1309 = vmatpush.bf16.msra.mxu0 0
    %1310 = vmatpush.bf16.msra.mxu0 0
    %1311 = vmatpush.bf16.msra.mxu0 0
    %1312 = vmatpush.bf16.msra.mxu0 %v1303
    %1313 = vmatmul.bf16.gmra.mxu0 %v1300
    %v1314 = vpop.f32.mrf.mxu0
    %v1315 = vadd.f32 0.0, %v1314
    %v1316 = vpop.f32.mrf.mxu0
    %1317 = vdwg.mxu0
    %1318 = vrot.lane.b32.xlu0 %v907, 40
    %v1319 = vpop.permute.xlu0 %1318
    %v1321 = vsel %vm103, %v1296, 0
    %v1324 = vsel %vm178, %v1319, 0
    %1326 = vmatpush.bf16.msra.mxu0 0
    %1327 = vmatpush.bf16.msra.mxu0 0
    %1328 = vmatpush.bf16.msra.mxu0 0
    %1329 = vmatpush.bf16.msra.mxu0 0
    %1330 = vmatpush.bf16.msra.mxu0 0
    %1331 = vmatpush.bf16.msra.mxu0 0
    %1332 = vmatpush.bf16.msra.mxu0 0
    %1333 = vmatpush.bf16.msra.mxu0 %v1324
    %1334 = vmatmul.bf16.gmra.mxu0 %v1321
    %v1335 = vpop.f32.mrf.mxu0
    %v1336 = vadd.f32 0.0, %v1335
    %v1337 = vpop.f32.mrf.mxu0
    %1338 = vdwg.mxu0
    %1341 = vrot.lane.b32.xlu0 %v1087, 8
    %v1342 = vpop.permute.xlu0 %1341
    %1343 = vrot.lane.b32.xlu0 %v1108, 8
    %v1344 = vpop.permute.xlu0 %1343
    %1349 = vrot.lane.b32.xlu0 %v1201, 16
    %v1350 = vpop.permute.xlu0 %1349
    %1351 = vrot.lane.b32.xlu0 %v1222, 16
    %v1352 = vpop.permute.xlu0 %1351
    %1357 = vrot.lane.b32.xlu0 %v1315, 24
    %v1358 = vpop.permute.xlu0 %1357
    %1359 = vrot.lane.b32.xlu0 %v1336, 24
    %v1360 = vpop.permute.xlu0 %1359
    %v1363 = vsel %vm103, %v973, %v1342
    %v1364 = vsel %vm103, %v994, %v1344
    %v1365 = vsel %vm584, %v1363, %v1350
    %v1366 = vsel %vm584, %v1364, %v1352
    %v1367 = vsel %vm587, %v1365, %v1358
    %v1368 = vsel %vm587, %v1366, %v1360
    %s1369 = scalar_lea.vmem %s2, 16
    %v1370 = vld [vmem:[%s1369] sm:$0xf]
    %v1371 = vld [vmem:[%s1369 + $0x4] sm:$0xf]
    %v1372 = vld [vmem:[%s1369 + $0x8] sm:$0xf]
    %v1373 = vld [vmem:[%s1369 + $0xc] sm:$0xf]
    %v1374 = vpack.c.bf16 %v1368, %v1367
    %v1375 = vperm.slane %v842, 1
    %v1380 = vunpack.c.l.b16 %v1370
    %v1381 = vunpack.c.l.b16 %v1371
    %v1382 = vunpack.c.l.b16 %v1372
    %v1383 = vunpack.c.l.b16 %v1373
    %v1384 = vpack.c.b16 %v1381, %v1380
    %v1385 = vpack.c.b16 %v1383, %v1382
    %v1389 = vsel %vm78, %v1374, 0
    %1391 = vmatpush.bf16.msra.mxu0 0
    %1392 = vmatpush.bf16.msra.mxu0 0
    %1393 = vmatpush.bf16.msra.mxu0 0
    %1394 = vmatpush.bf16.msra.mxu0 0
    %1395 = vmatpush.bf16.msra.mxu0 0
    %1396 = vmatpush.bf16.msra.mxu0 0
    %1397 = vmatpush.bf16.msra.mxu0 %v1385
    %1398 = vmatpush.bf16.msra.mxu0 %v1384
    %1399 = vmatmul.bf16.gmra.mxu0 %v1389
    %v1400 = vpop.f32.mrf.mxu0
    %v1401 = vadd.f32 %v1375, %v1400
    %v1402 = vpop.f32.mrf.mxu0
    %v1403 = vadd.f32 %v1375, %v1402
    %1404 = vdwg.mxu0
    %v1405 = vadd.f32 %v1401, %v839
    %v1406 = vadd.f32 %v1403, %v840
    %v1407 = vsel %vm78, %v1405, 0.0
    %1408 = vadd.xlane.f32.xlu0 %v1407
    %v1409 = vpop.xlane.xlu0 %1408
    %v1410 = vsel %vm78, %v1406, 0.0
    %1411 = vadd.xlane.f32.xlu0 %v1410
    %v1412 = vpop.xlane.xlu0 %1411
    %v1413 = vmul.f32 %v1409, %v639
    %v1414 = vmul.f32 %v1412, %v639
    %v1415 = vsub.f32 %v1405, %v1413
    %v1416 = vsub.f32 %v1406, %v1414
    %v1417 = vmul.f32 %v1415, %v1415
    %v1418 = vmul.f32 %v1416, %v1416
    %v1419 = vsel %vm78, %v1417, 0.0
    %1420 = vadd.xlane.f32.xlu0 %v1419
    %v1421 = vpop.xlane.xlu0 %1420
    %v1422 = vsel %vm78, %v1418, 0.0
    %1423 = vadd.xlane.f32.xlu0 %v1422
    %v1424 = vpop.xlane.xlu0 %1423
    %v1425 = vmul.f32 %v1421, %v639
    %v1426 = vmul.f32 %v1424, %v639
    %v1427 = vadd.f32 %v1425, 1e-05
    %v1428 = vadd.f32 %v1426, 1e-05
    %v1429 = vrsqrt.pop %v1427
    %v1430 = vmul.f32 %v1429, %v1427
    %v1431 = vmul.f32 %v1430, %v1429
    %v1432 = vmul.f32 0.5, %v1431
    %v1433 = vsub.f32 1.5, %v1432
    %v1434 = vmul.f32 %v1429, %v1433
    %vm1435 = vweird.f32 %v1427
    %vm1436 = vweird.f32 %v1429
    %vm1437 = vmor %vm1435, %vm1436
    %v1438 = vsel %vm1437, %v1429, %v1434
    %v1439 = vrsqrt.pop %v1428
    %v1440 = vmul.f32 %v1439, %v1428
    %v1441 = vmul.f32 %v1440, %v1439
    %v1442 = vmul.f32 0.5, %v1441
    %v1443 = vsub.f32 1.5, %v1442
    %v1444 = vmul.f32 %v1439, %v1443
    %vm1445 = vweird.f32 %v1428
    %vm1446 = vweird.f32 %v1439
    %vm1447 = vmor %vm1445, %vm1446
    %v1448 = vsel %vm1447, %v1439, %v1444
    %v1449 = vmul.f32 %v1415, %v1438
    %v1450 = vmul.f32 %v1416, %v1448
    %v1451 = vperm.slane %v842, 2
    %v1452 = vmul.f32 %v1449, %v1451
    %v1453 = vmul.f32 %v1450, %v1451
    %v1454 = vperm.slane %v842, 3
    %v1455 = vadd.f32 %v1452, %v1454
    %v1456 = vadd.f32 %v1453, %v1454
    %s1457 = scalar_lea.vmem %s3, 16
    %v1458 = vld [vmem:[%s1457] sm:$0xf]
    %v1459 = vld [vmem:[%s1457 + $0x4] sm:$0xf]
    %v1460 = vld [vmem:[%s1457 + $0x8] sm:$0xf]
    %v1461 = vld [vmem:[%s1457 + $0xc] sm:$0xf]
    %v1462 = vpack.c.bf16 %v1456, %v1455
    %v1463 = vperm.slane %v842, 4
    %v1468 = vunpack.c.l.b16 %v1458
    %v1469 = vunpack.c.l.b16 %v1459
    %v1470 = vunpack.c.l.b16 %v1460
    %v1471 = vunpack.c.l.b16 %v1461
    %v1472 = vpack.c.b16 %v1469, %v1468
    %v1473 = vpack.c.b16 %v1471, %v1470
    %v1477 = vsel %vm78, %v1462, 0
    %1479 = vmatpush.bf16.msra.mxu0 0
    %1480 = vmatpush.bf16.msra.mxu0 0
    %1481 = vmatpush.bf16.msra.mxu0 0
    %1482 = vmatpush.bf16.msra.mxu0 0
    %1483 = vmatpush.bf16.msra.mxu0 0
    %1484 = vmatpush.bf16.msra.mxu0 0
    %1485 = vmatpush.bf16.msra.mxu0 %v1473
    %1486 = vmatpush.bf16.msra.mxu0 %v1472
    %1487 = vmatmul.bf16.gmra.mxu0 %v1477
    %v1488 = vpop.f32.mrf.mxu0
    %v1489 = vadd.f32 %v1463, %v1488
    %v1490 = vpop.f32.mrf.mxu0
    %v1491 = vadd.f32 %v1463, %v1490
    %1492 = vdwg.mxu0
    %v1493 = vmul.f32 %v1489, 0.5
    %v1494 = vmul.f32 %v1491, 0.5
    %v1495 = vmul.f32 %v1489, 0.044715
    %v1496 = vmul.f32 %v1491, 0.044715
    %v1497 = vmul.f32 %v1495, %v1489
    %v1498 = vmul.f32 %v1496, %v1491
    %v1499 = vmul.f32 %v1497, %v1489
    %v1500 = vmul.f32 %v1498, %v1491
    %v1501 = vadd.f32 %v1489, %v1499
    %v1502 = vadd.f32 %v1491, %v1500
    %v1503 = vmul.f32 %v1501, 0.7978846
    %v1504 = vmul.f32 %v1502, 0.7978846
    %v1505 = vtanh.pop %v1503
    %v1506 = vtanh.pop %v1504
    %v1507 = vadd.f32 %v1505, 1.0
    %v1508 = vadd.f32 %v1506, 1.0
    %v1509 = vmul.f32 %v1493, %v1507
    %v1510 = vmul.f32 %v1494, %v1508
    %s1511 = scalar_lea.vmem %s4, 32
    %v1512 = vld [vmem:[%s1511] sm:$0xf]
    %v1513 = vld [vmem:[%s1511 + $0x4] sm:$0xf]
    %v1514 = vld [vmem:[%s1511 + $0x8] sm:$0xf]
    %v1515 = vld [vmem:[%s1511 + $0xc] sm:$0xf]
    %v1516 = vld [vmem:[%s1511 + $0x10] sm:$0xf]
    %v1517 = vld [vmem:[%s1511 + $0x14] sm:$0xf]
    %v1518 = vld [vmem:[%s1511 + $0x18] sm:$0xf]
    %v1519 = vld [vmem:[%s1511 + $0x1c] sm:$0xf]
    %v1520 = vpack.c.bf16 %v1510, %v1509
    %v1521 = vperm.slane %v842, 5
    %v1530 = vunpack.c.l.b16 %v1512
    %v1531 = vunpack.c.l.b16 %v1513
    %v1532 = vunpack.c.l.b16 %v1514
    %v1533 = vunpack.c.l.b16 %v1515
    %v1534 = vunpack.c.l.b16 %v1516
    %v1535 = vunpack.c.l.b16 %v1517
    %v1536 = vunpack.c.l.b16 %v1518
    %v1537 = vunpack.c.l.b16 %v1519
    %v1538 = vpack.c.b16 %v1531, %v1530
    %v1539 = vpack.c.b16 %v1533, %v1532
    %v1540 = vpack.c.b16 %v1535, %v1534
    %v1541 = vpack.c.b16 %v1537, %v1536
    %v1547 = vsel %vm771, %v1520, 0
    %1549 = vmatpush.bf16.msra.mxu0 0
    %1550 = vmatpush.bf16.msra.mxu0 0
    %1551 = vmatpush.bf16.msra.mxu0 0
    %1552 = vmatpush.bf16.msra.mxu0 0
    %1553 = vmatpush.bf16.msra.mxu0 %v1541
    %1554 = vmatpush.bf16.msra.mxu0 %v1540
    %1555 = vmatpush.bf16.msra.mxu0 %v1539
    %1556 = vmatpush.bf16.msra.mxu0 %v1538
    %1557 = vmatmul.bf16.gmra.mxu0 %v1547
    %v1558 = vpop.f32.mrf.mxu0
    %v1559 = vadd.f32 %v1521, %v1558
    %v1560 = vpop.f32.mrf.mxu0
    %v1561 = vadd.f32 %v1521, %v1560
    %1562 = vdwg.mxu0
    %v1563 = vadd.f32 %v1455, %v1559
    %v1564 = vadd.f32 %v1456, %v1561
    %v1565 = vsel %vm78, %v1563, 0.0
    %1566 = vadd.xlane.f32.xlu0 %v1565
    %v1567 = vpop.xlane.xlu0 %1566
    %v1568 = vsel %vm78, %v1564, 0.0
    %1569 = vadd.xlane.f32.xlu0 %v1568
    %v1570 = vpop.xlane.xlu0 %1569
    %v1571 = vmul.f32 %v1567, %v639
    %v1572 = vmul.f32 %v1570, %v639
    %v1573 = vsub.f32 %v1563, %v1571
    %v1574 = vsub.f32 %v1564, %v1572
    %v1575 = vmul.f32 %v1573, %v1573
    %v1576 = vmul.f32 %v1574, %v1574
    %v1577 = vsel %vm78, %v1575, 0.0
    %1578 = vadd.xlane.f32.xlu0 %v1577
    %v1579 = vpop.xlane.xlu0 %1578
    %v1580 = vsel %vm78, %v1576, 0.0
    %1581 = vadd.xlane.f32.xlu0 %v1580
    %v1582 = vpop.xlane.xlu0 %1581
    %v1583 = vmul.f32 %v1579, %v639
    %v1584 = vmul.f32 %v1582, %v639
    %v1585 = vadd.f32 %v1583, 1e-05
    %v1586 = vadd.f32 %v1584, 1e-05
    %v1587 = vrsqrt.pop %v1585
    %v1588 = vmul.f32 %v1587, %v1585
    %v1589 = vmul.f32 %v1588, %v1587
    %v1590 = vmul.f32 0.5, %v1589
    %v1591 = vsub.f32 1.5, %v1590
    %v1592 = vmul.f32 %v1587, %v1591
    %vm1593 = vweird.f32 %v1585
    %vm1594 = vweird.f32 %v1587
    %vm1595 = vmor %vm1593, %vm1594
    %v1596 = vsel %vm1595, %v1587, %v1592
    %v1597 = vrsqrt.pop %v1586
    %v1598 = vmul.f32 %v1597, %v1586
    %v1599 = vmul.f32 %v1598, %v1597
    %v1600 = vmul.f32 0.5, %v1599
    %v1601 = vsub.f32 1.5, %v1600
    %v1602 = vmul.f32 %v1597, %v1601
    %vm1603 = vweird.f32 %v1586
    %vm1604 = vweird.f32 %v1597
    %vm1605 = vmor %vm1603, %vm1604
    %v1606 = vsel %vm1605, %v1597, %v1602
    %v1607 = vmul.f32 %v1573, %v1596
    %v1608 = vmul.f32 %v1574, %v1606
    %v1609 = vperm.slane %v842, 6
    %v1610 = vmul.f32 %v1607, %v1609
    %v1611 = vmul.f32 %v1608, %v1609
    %v1612 = vperm.slane %v842, 7
    %v1613 = vadd.f32 %v1610, %v1612
    %v1614 = vadd.f32 %v1611, %v1612
    %1615 = vst.msk [vmem:[#allocation7] sm:$0xff] %vm78, %v1613
    %1616 = vst.msk [vmem:[#allocation7 + $0x8] sm:$0xff] %vm78, %v1614
    // Predicated region
    $region34: #{tpu_custom_call.1} parent=1 // pred_check
      _
    $region35: #{tpu_custom_call.1} parent=1 // pred_check_branch
      %1618 = sbr.rel (0) target = $region37
    $region36: #{tpu_custom_call.1} parent=1 // pred_region
      %1620 = vsyncadd [#allocation4], 0
      %s1621 = sshll.u32 [#allocation7], 4
      %s1622 = int_to_ptr.vmem [resolvable:$true] %s1621
      %s1623 = sshll.u32 %s6, 4
      %s1624 = int_to_ptr.hbm [resolvable:$true] %s1623
      %1629 = dma.vmem_to_hbm [thread:$0]  %s1622, 256, %s1624, [#allocation4], 128, 128, 8
    $region37: #{tpu_custom_call.1} parent=1 // pred_fallthru
      _
    // Predicated region
    $region38: #{tpu_custom_call.1} parent=1 // pred_check
      _
    $region39: #{tpu_custom_call.1} parent=1 // pred_check_branch
      %1631 = sbr.rel (0) target = $region41
    $region40: #{tpu_custom_call.1} parent=1 // pred_region
      %1633 = dma.done [#allocation4], 256
    $region41: #{tpu_custom_call.1} parent=1 // pred_fallthru
      _
    %1634 = vsyncpa [#allocation3], 1
    %1635 = vsyncpa [#allocation6], 1
    %1636 = vsyncpa [#allocation4], 1

</llo_original>
